<compile_context>
chip_gen: v7x
topology: tpu7x:2x2x1
jax: 0.10.0
libtpu: 0.0.40
codegen_flags: <defaults>
</compile_context>

<pallas_src>
import numpy as np
import jax
import jax.numpy as jnp
from jax.experimental import pallas as pl
from jax.experimental.pallas import tpu as pltpu

LN_EPS = 1e-5  # PyTorch nn.LayerNorm default


# ----------------------------------------------------------------------------
# in-kernel math helpers
# ----------------------------------------------------------------------------
def _erf(x):
  # Eigen / XLA f32 rational approximation of erf, so the GELU below matches
  # PyTorch's exact (erf-based) nn.GELU() to f32 precision.
  x = jnp.clip(x, -4.0, 4.0)
  x2 = x * x
  p = x2 * (-2.72614225801306e-10) + 2.77068142495902e-08
  p = x2 * p + (-2.10102402082508e-06)
  p = x2 * p + (-5.69250639462346e-05)
  p = x2 * p + (-7.34990630326855e-04)
  p = x2 * p + (-2.95459980854025e-03)
  p = x2 * p + (-1.60960333262415e-02)
  p = x * p
  q = x2 * (-1.45660718464996e-05) + (-2.13374055278905e-04)
  q = x2 * q + (-1.68282697438203e-03)
  q = x2 * q + (-7.37332916720468e-03)
  q = x2 * q + (-1.42647390514189e-02)
  return p / q


def _gelu(x):
  return 0.5 * x * (1.0 + _erf(x * 0.7071067811865475244))


def _layernorm(x, g, b):
  mu = jnp.mean(x, axis=-1, keepdims=True)
  var = jnp.mean(jnp.square(x - mu), axis=-1, keepdims=True)
  return (x - mu) * jax.lax.rsqrt(var + LN_EPS) * g + b


# ----------------------------------------------------------------------------
# fused GFNet kernel: patch-embed (d==0) + Block(d) + head (d==depth-1)
# ----------------------------------------------------------------------------
def _gfnet_kernel(patches_ref, projw_ref, posb_ref,
                  ln1g_ref, ln1b_ref, dfwd_ref, dinv_ref,
                  fr_ref, fi_ref, ln2g_ref, ln2b_ref,
                  fc1w_ref, fc1b_ref, fc2w_ref, fc2b_ref,
                  normg_ref, normb_ref, headw_ref, headb_ref,
                  out_ref, resid_ref):
  d = pl.program_id(1)
  n_depth = pl.num_programs(1)
  bt, n_tok, k_patch = patches_ref.shape          # batch tile, tokens, patch dim
  c = fr_ref.shape[2]                             # embed dim

  # ---- depth step 0: PatchEmbed (stride==kernel Conv2d as matmul)
  #      + fused (conv bias + pos_embed) add ----
  @pl.when(d == 0)
  def _():
    pch = patches_ref[...].reshape(bt * n_tok, k_patch)       # bf16 rows
    tok = jnp.dot(pch, projw_ref[...],
                  preferred_element_type=jnp.float32)          # (bt*N, C) f32
    tok = tok.reshape(bt, n_tok, c) + posb_ref[...][None]      # bias + pos in one add
    resid_ref[...] = tok.reshape(bt * n_tok, c)                # resident f32 residual

  # ---- Block d: x + MLP(LN2(GlobalFilter(LN1(x)))) ----
  x = resid_ref[...]                              # (bt*N, C) f32
  xn = _layernorm(x, ln1g_ref[0], ln1b_ref[0])
  xnb = xn.astype(jnp.bfloat16).reshape(bt, n_tok, c)   # cast once for the DFT dots

  dfwd = dfwd_ref[...]                            # (2N, N) bf16: [cos; -sin]/sqrt(HW)
  dinv = dinv_ref[...]                            # (N, 2N) bf16: [cos, -sin]/sqrt(HW)
  wr = fr_ref[0]                                  # (N, C) f32 Hermitian-extended filter
  wi = fi_ref[0]
  ys = []
  for s in range(bt):                             # static unroll over the batch tile
    f2 = jnp.dot(dfwd, xnb[s],
                 preferred_element_type=jnp.float32)        # (2N, C) = [Re F; Im F]
    fr_s, fi_s = f2[:n_tok], f2[n_tok:]
    gr = fr_s * wr - fi_s * wi                    # Re(F * W_full)
    gi = fr_s * wi + fi_s * wr                    # Im(F * W_full)
    g = jnp.concatenate([gr, gi], axis=0).astype(jnp.bfloat16)   # (2N, C)
    ys.append(jnp.dot(dinv, g,
                      preferred_element_type=jnp.float32))  # Re(IDFT2(G))  (N, C)
  y = jnp.concatenate(ys, axis=0)                 # (bt*N, C)

  yn = _layernorm(y, ln2g_ref[0], ln2b_ref[0])
  h = jnp.dot(yn.astype(jnp.bfloat16), fc1w_ref[0],
              preferred_element_type=jnp.float32) + fc1b_ref[0]
  h = _gelu(h)                                    # exact erf GELU, f32
  m = jnp.dot(h.astype(jnp.bfloat16), fc2w_ref[0],
              preferred_element_type=jnp.float32) + fc2b_ref[0]
  resid_ref[...] = x + m                          # single residual around the block

  # ---- last depth step: final LayerNorm + token mean + classifier head ----
  @pl.when(d == n_depth - 1)
  def _():
    rn = _layernorm(resid_ref[...], normg_ref[...], normb_ref[...])
    pooled = jnp.mean(rn.reshape(bt, n_tok, c), axis=1)      # (bt, C)
    out_ref[...] = (jnp.dot(pooled, headw_ref[...],
                            preferred_element_type=jnp.float32)
                    + headb_ref[...])


# ----------------------------------------------------------------------------
# parameter setup (host-side glue)
# ----------------------------------------------------------------------------
def _dft_matrices(H, W):
  # Orthonormal 2-D DFT over the flattened (H, W) token grid, index = u*W + v.
  u = np.arange(H)
  v = np.arange(W)
  th_h = 2.0 * np.pi * np.outer(u, u) / H
  th_w = 2.0 * np.pi * np.outer(v, v) / W
  theta = th_h[:, None, :, None] + th_w[None, :, None, :]   # [u, v, a, b]
  theta = theta.reshape(H * W, H * W)
  s = 1.0 / np.sqrt(H * W)
  return (np.cos(theta) * s).astype(np.float32), (np.sin(theta) * s).astype(np.float32)


def _full_spectrum_weight(cw, W):
  # cw: (H, W//2+1, C, 2) half-spectrum complex filter (torch complex_weight).
  # Hermitian-extend so that  irfft2(rfft2(x) * w_half)
  #                        == Re( idft2( dft2(x) * w_full ) )  for real x.
  H, Wf, C, _ = cw.shape
  wr = np.zeros((H, W, C), np.float32)
  wi = np.zeros((H, W, C), np.float32)
  wr[:, :Wf] = cw[..., 0]
  wi[:, :Wf] = cw[..., 1]
  for v in range(Wf, W):
    for u in range(H):
      wr[u, v] = cw[(H - u) % H, W - v, :, 0]
      wi[u, v] = -cw[(H - u) % H, W - v, :, 1]
  return wr.reshape(H * W, C), wi.reshape(H * W, C)


def init_gfnet_params(key, *, img_size, patch_size, in_chans, embed_dim,
                      depth, mlp_ratio, num_classes):
  Hp = img_size // patch_size
  N = Hp * Hp
  wf = Hp // 2 + 1
  hidden = int(embed_dim * mlp_ratio)
  K = in_chans * patch_size * patch_size

  keys = iter(jax.random.split(key, 4 + 3 * depth))

  def init_w(shape):
    return 0.02 * jax.random.normal(next(keys), shape, jnp.float32)

  params = {}
  # PatchEmbed: Conv2d(E, Cin, p, p) flattened to a (K, E) matmul weight (bf16).
  conv_w = init_w((embed_dim, in_chans, patch_size, patch_size))
  params["proj_w"] = conv_w.reshape(embed_dim, K).T.astype(jnp.bfloat16)
  params["proj_b"] = jnp.zeros((1, embed_dim), jnp.float32)
  params["pos"] = jnp.zeros((N, embed_dim), jnp.float32)    # nn.Parameter(zeros)

  # Fused DFT matrices: forward [cos; -sin] (2N,N), inverse [cos, -sin] (N,2N).
  dc, ds = _dft_matrices(Hp, Hp)
  params["dft_fwd"] = jnp.asarray(np.concatenate([dc, -ds], axis=0)).astype(jnp.bfloat16)
  params["dft_inv"] = jnp.asarray(np.concatenate([dc, -ds], axis=1)).astype(jnp.bfloat16)

  # Per-block weights stacked along a leading depth axis (streamed per grid step).
  filt_r, filt_i, fc1w, fc2w = [], [], [], []
  for _ in range(depth):
    cw = 0.02 * np.asarray(
        jax.random.normal(next(keys), (Hp, wf, embed_dim, 2), jnp.float32))
    fr, fi = _full_spectrum_weight(cw, Hp)
    filt_r.append(fr)
    filt_i.append(fi)
    fc1w.append(np.asarray(init_w((embed_dim, hidden))))
    fc2w.append(np.asarray(init_w((hidden, embed_dim))))

  params["ln1_g"] = jnp.ones((depth, 1, embed_dim), jnp.float32)
  params["ln1_b"] = jnp.zeros((depth, 1, embed_dim), jnp.float32)
  params["filt_r"] = jnp.asarray(np.stack(filt_r))          # (depth, N, C) f32
  params["filt_i"] = jnp.asarray(np.stack(filt_i))
  params["ln2_g"] = jnp.ones((depth, 1, embed_dim), jnp.float32)
  params["ln2_b"] = jnp.zeros((depth, 1, embed_dim), jnp.float32)
  params["fc1_w"] = jnp.asarray(np.stack(fc1w)).astype(jnp.bfloat16)
  params["fc1_b"] = jnp.zeros((depth, 1, hidden), jnp.float32)
  params["fc2_w"] = jnp.asarray(np.stack(fc2w)).astype(jnp.bfloat16)
  params["fc2_b"] = jnp.zeros((depth, 1, embed_dim), jnp.float32)

  params["norm_g"] = jnp.ones((1, embed_dim), jnp.float32)
  params["norm_b"] = jnp.zeros((1, embed_dim), jnp.float32)
  params["head_w"] = init_w((embed_dim, num_classes))
  params["head_b"] = jnp.zeros((1, num_classes), jnp.float32)
  return params


# ----------------------------------------------------------------------------
# full forward pass: one fused pallas_call
# ----------------------------------------------------------------------------
def gfnet_forward(x_nchw, params, cfg):
  p = cfg["patch_size"]
  B, Cin, Hi, Wi = x_nchw.shape
  Hp, Wp = Hi // p, Wi // p
  N = Hp * Wp
  C = cfg["embed_dim"]
  depth = cfg["depth"]
  nc = cfg["num_classes"]
  hidden = int(C * cfg["mlp_ratio"])
  K = Cin * p * p

  # glue: unfold non-overlapping patches; stride==kernel Conv2d == matmul.
  # Cast to bf16 here (bit-identical to an in-kernel cast before the bf16 dot,
  # but halves patch DMA bytes).
  patches = x_nchw.reshape(B, Cin, Hp, p, Wp, p)
  patches = patches.transpose(0, 2, 4, 1, 3, 5).reshape(B, N, K).astype(jnp.bfloat16)

  # Conv2d bias + pos_embed folded into a single (N, C) add inside the kernel.
  pos_bias = params["pos"] + params["proj_b"]

  # Batch tile: fold several samples into the matmul M dimension (target
  # Bt*N >= ~256 rows for MXU fill), capped to keep the DFT unroll / live
  # activation footprint small.  Larger Bt also amortizes per-block weight
  # streaming (weights are re-streamed once per batch tile).
  bt = min(B, max(1, (256 + N - 1) // N))
  bt = min(bt, 8)
  while B % bt:
    bt -= 1
  n_bt = B // bt
  grid = (n_bt, depth)

  def rep(shape):          # replicated (constant-index) operand: DMA'd once
    n = len(shape)
    return pl.BlockSpec(shape, lambda b, d: (0,) * n)

  def per_depth(shape):    # leading depth axis, sliced per inner grid step
    n = len(shape)
    return pl.BlockSpec((1,) + shape, lambda b, d: (d,) + (0,) * n)

  in_specs = [
      pl.BlockSpec((bt, N, K), lambda b, d: (b, 0, 0)),  # patches (per batch tile)
      rep((K, C)), rep((N, C)),                          # proj_w, pos+bias
      per_depth((1, C)), per_depth((1, C)),              # ln1 g / b
      rep((2 * N, N)), rep((N, 2 * N)),                  # fused DFT fwd / inv
      per_depth((N, C)), per_depth((N, C)),              # filter Re / Im
      per_depth((1, C)), per_depth((1, C)),              # ln2 g / b
      per_depth((C, hidden)), per_depth((1, hidden)),    # fc1 w / b
      per_depth((hidden, C)), per_depth((1, C)),         # fc2 w / b
      rep((1, C)), rep((1, C)),                          # final norm g / b
      rep((C, nc)), rep((1, nc)),                        # head w / b
  ]
  out_spec = pl.BlockSpec((bt, nc), lambda b, d: (b, 0))

  return pl.pallas_call(
      _gfnet_kernel,
      out_shape=jax.ShapeDtypeStruct((B, nc), jnp.float32),
      grid=grid,
      in_specs=in_specs,
      out_specs=out_spec,
      scratch_shapes=[pltpu.VMEM((bt * N, C), jnp.float32)],  # resident residual
      compiler_params=pltpu.CompilerParams(
          dimension_semantics=("parallel", "arbitrary"),
          vmem_limit_bytes=64 * 1024 * 1024),
  )(patches, params["proj_w"], pos_bias,
    params["ln1_g"], params["ln1_b"], params["dft_fwd"], params["dft_inv"],
    params["filt_r"], params["filt_i"], params["ln2_g"], params["ln2_b"],
    params["fc1_w"], params["fc1_b"], params["fc2_w"], params["fc2_b"],
    params["norm_g"], params["norm_b"], params["head_w"], params["head_b"])


# ----------------------------------------------------------------------------
if __name__ == "__main__":
  cfg = dict(img_size=16, patch_size=4, in_chans=3, embed_dim=32,
             depth=2, mlp_ratio=4.0, num_classes=10)
  key = jax.random.PRNGKey(0)
  pkey, xkey = jax.random.split(key)
  params = init_gfnet_params(pkey, **cfg)

  x = jax.random.normal(
      xkey, (2, cfg["in_chans"], cfg["img_size"], cfg["img_size"]), jnp.float32)

  out = gfnet_forward(x, params, cfg)
  out = jax.block_until_ready(out)
  assert out.shape == (2, cfg["num_classes"])
  assert bool(jnp.all(jnp.isfinite(out)))
  print("KERNEL_OK")
</pallas_src>

<mosaic_0001>
module attributes {stable_mosaic.version = 11 : i64} {
  func.func @_gfnet_kernel(%arg0: i32, %arg1: i32, %arg2: memref<2x16x48xbf16, #tpu.memory_space<vmem>>, %arg3: memref<48x32xbf16, #tpu.memory_space<vmem>>, %arg4: memref<16x32xf32, #tpu.memory_space<vmem>>, %arg5: memref<1x1x32xf32, #tpu.memory_space<vmem>>, %arg6: memref<1x1x32xf32, #tpu.memory_space<vmem>>, %arg7: memref<32x16xbf16, #tpu.memory_space<vmem>>, %arg8: memref<16x32xbf16, #tpu.memory_space<vmem>>, %arg9: memref<1x16x32xf32, #tpu.memory_space<vmem>>, %arg10: memref<1x16x32xf32, #tpu.memory_space<vmem>>, %arg11: memref<1x1x32xf32, #tpu.memory_space<vmem>>, %arg12: memref<1x1x32xf32, #tpu.memory_space<vmem>>, %arg13: memref<1x32x128xbf16, #tpu.memory_space<vmem>>, %arg14: memref<1x1x128xf32, #tpu.memory_space<vmem>>, %arg15: memref<1x128x32xbf16, #tpu.memory_space<vmem>>, %arg16: memref<1x1x32xf32, #tpu.memory_space<vmem>>, %arg17: memref<1x32xf32, #tpu.memory_space<vmem>>, %arg18: memref<1x32xf32, #tpu.memory_space<vmem>>, %arg19: memref<32x10xf32, #tpu.memory_space<vmem>>, %arg20: memref<1x10xf32, #tpu.memory_space<vmem>>, %arg21: memref<2x10xf32, #tpu.memory_space<vmem>>, %arg22: memref<32x32xf32, #tpu.memory_space<vmem>>) attributes {dimension_semantics = [#tpu.dimension_semantics<parallel>, #tpu.dimension_semantics<arbitrary>], iteration_bounds = array<i64: 1, 2>, scalar_prefetch = 0 : i64, scratch_operands = 1 : i64, tpu.core_type = #tpu.core_type<tc>, window_params = [{transform_indices = @transform_0, window_bounds = array<i64: 2, 16, 48>}, {pipeline_mode = #tpu.pipeline_mode<synchronous>, transform_indices = @transform_1, window_bounds = array<i64: 48, 32>}, {pipeline_mode = #tpu.pipeline_mode<synchronous>, transform_indices = @transform_2, window_bounds = array<i64: 16, 32>}, {transform_indices = @transform_3, window_bounds = array<i64: 1, 1, 32>}, {transform_indices = @transform_4, window_bounds = array<i64: 1, 1, 32>}, {pipeline_mode = #tpu.pipeline_mode<synchronous>, transform_indices = @transform_5, window_bounds = array<i64: 32, 16>}, {pipeline_mode = #tpu.pipeline_mode<synchronous>, transform_indices = @transform_6, window_bounds = array<i64: 16, 32>}, {transform_indices = @transform_7, window_bounds = array<i64: 1, 16, 32>}, {transform_indices = @transform_8, window_bounds = array<i64: 1, 16, 32>}, {transform_indices = @transform_9, window_bounds = array<i64: 1, 1, 32>}, {transform_indices = @transform_10, window_bounds = array<i64: 1, 1, 32>}, {transform_indices = @transform_11, window_bounds = array<i64: 1, 32, 128>}, {transform_indices = @transform_12, window_bounds = array<i64: 1, 1, 128>}, {transform_indices = @transform_13, window_bounds = array<i64: 1, 128, 32>}, {transform_indices = @transform_14, window_bounds = array<i64: 1, 1, 32>}, {pipeline_mode = #tpu.pipeline_mode<synchronous>, transform_indices = @transform_15, window_bounds = array<i64: 1, 32>}, {pipeline_mode = #tpu.pipeline_mode<synchronous>, transform_indices = @transform_16, window_bounds = array<i64: 1, 32>}, {pipeline_mode = #tpu.pipeline_mode<synchronous>, transform_indices = @transform_17, window_bounds = array<i64: 32, 10>}, {pipeline_mode = #tpu.pipeline_mode<synchronous>, transform_indices = @transform_18, window_bounds = array<i64: 1, 10>}, {transform_indices = @transform_19, window_bounds = array<i64: 2, 10>}]} {
    %c0_i32 = arith.constant 0 : i32
    %0 = arith.cmpi eq, %arg1, %c0_i32 : i32
    %1 = arith.extui %0 : i1 to i32
    %c0_i32_0 = arith.constant 0 : i32
    %2 = arith.cmpi ne, %1, %c0_i32_0 : i32
    scf.if %2 {
      %c0_71 = arith.constant 0 : index
      %c0_72 = arith.constant 0 : index
      %c0_73 = arith.constant 0 : index
      %160 = vector.load %arg2[%c0_71, %c0_72, %c0_73] : memref<2x16x48xbf16, #tpu.memory_space<vmem>>, vector<2x16x48xbf16>
      %161 = vector.shape_cast %160 : vector<2x16x48xbf16> to vector<32x48xbf16>
      %c0_74 = arith.constant 0 : index
      %c0_75 = arith.constant 0 : index
      %162 = vector.load %arg3[%c0_74, %c0_75] : memref<48x32xbf16, #tpu.memory_space<vmem>>, vector<48x32xbf16>
      %cst_76 = arith.constant dense<0.000000e+00> : vector<32x32xf32>
      %163 = tpu.matmul %161, %162, %cst_76 {dimension_numbers = #tpu.dot_dimension_numbers<[1], [0], [0], [1], [0, 0, 1, 1], [], []>} : vector<32x48xbf16>, vector<48x32xbf16>, vector<32x32xf32> -> vector<32x32xf32>
      %164 = vector.shape_cast %163 : vector<32x32xf32> to vector<2x16x32xf32>
      %c0_77 = arith.constant 0 : index
      %c0_78 = arith.constant 0 : index
      %165 = vector.load %arg4[%c0_77, %c0_78] : memref<16x32xf32, #tpu.memory_space<vmem>>, vector<16x32xf32>
      %166 = vector.shape_cast %165 : vector<16x32xf32> to vector<1x16x32xf32>
      %167 = vector.broadcast %166 : vector<1x16x32xf32> to vector<2x16x32xf32>
      %168 = arith.addf %164, %167 : vector<2x16x32xf32>
      %169 = vector.shape_cast %168 : vector<2x16x32xf32> to vector<32x32xf32>
      %c0_79 = arith.constant 0 : index
      %c0_80 = arith.constant 0 : index
      %170 = vector.load %arg22[%c0_79, %c0_80] : memref<32x32xf32, #tpu.memory_space<vmem>>, vector<32x32xf32>
      tpu.vector_store %arg22[%c0_79, %c0_80], %169 {strides = array<i32>} : memref<32x32xf32, #tpu.memory_space<vmem>>, vector<32x32xf32>,
    } else {
    }
    %c0 = arith.constant 0 : index
    %c0_1 = arith.constant 0 : index
    %3 = vector.load %arg22[%c0, %c0_1] : memref<32x32xf32, #tpu.memory_space<vmem>>, vector<32x32xf32>
    %c0_2 = arith.constant 0 : index
    %c0_3 = arith.constant 0 : index
    %c0_4 = arith.constant 0 : index
    %4 = vector.load %arg5[%c0_2, %c0_3, %c0_4] : memref<1x1x32xf32, #tpu.memory_space<vmem>>, vector<1x1x32xf32>
    %5 = vector.shape_cast %4 : vector<1x1x32xf32> to vector<1x32xf32>
    %c0_5 = arith.constant 0 : index
    %c0_6 = arith.constant 0 : index
    %c0_7 = arith.constant 0 : index
    %6 = vector.load %arg6[%c0_5, %c0_6, %c0_7] : memref<1x1x32xf32, #tpu.memory_space<vmem>>, vector<1x1x32xf32>
    %7 = vector.shape_cast %6 : vector<1x1x32xf32> to vector<1x32xf32>
    %cst = arith.constant dense<0.000000e+00> : vector<32xf32>
    %8 = vector.multi_reduction <add>, %3, %cst [1] : vector<32x32xf32> to vector<32xf32>
    %9 = vector.shape_cast %8 : vector<32xf32> to vector<32x1xf32>
    %cst_8 = arith.constant 3.200000e+01 : f32
    %10 = vector.broadcast %cst_8 : f32 to vector<32x1xf32>
    %11 = arith.divf %9, %10 : vector<32x1xf32>
    %12 = vector.broadcast %11 : vector<32x1xf32> to vector<32x32xf32>
    %13 = arith.subf %3, %12 : vector<32x32xf32>
    %14 = arith.mulf %13, %13 : vector<32x32xf32>
    %cst_9 = arith.constant dense<0.000000e+00> : vector<32xf32>
    %15 = vector.multi_reduction <add>, %14, %cst_9 [1] : vector<32x32xf32> to vector<32xf32>
    %16 = vector.shape_cast %15 : vector<32xf32> to vector<32x1xf32>
    %cst_10 = arith.constant 3.200000e+01 : f32
    %17 = vector.broadcast %cst_10 : f32 to vector<32x1xf32>
    %18 = arith.divf %16, %17 : vector<32x1xf32>
    %19 = vector.broadcast %11 : vector<32x1xf32> to vector<32x32xf32>
    %20 = arith.subf %3, %19 : vector<32x32xf32>
    %cst_11 = arith.constant 9.99999974E-6 : f32
    %21 = vector.broadcast %cst_11 : f32 to vector<32x1xf32>
    %22 = arith.addf %18, %21 : vector<32x1xf32>
    %23 = math.rsqrt %22 : vector<32x1xf32>
    %24 = vector.broadcast %23 : vector<32x1xf32> to vector<32x32xf32>
    %25 = arith.mulf %20, %24 : vector<32x32xf32>
    %26 = vector.broadcast %5 : vector<1x32xf32> to vector<32x32xf32>
    %27 = arith.mulf %25, %26 : vector<32x32xf32>
    %28 = vector.broadcast %7 : vector<1x32xf32> to vector<32x32xf32>
    %29 = arith.addf %27, %28 : vector<32x32xf32>
    %30 = arith.truncf %29 : vector<32x32xf32> to vector<32x32xbf16>
    %31 = vector.shape_cast %30 : vector<32x32xbf16> to vector<2x16x32xbf16>
    %c0_12 = arith.constant 0 : index
    %c0_13 = arith.constant 0 : index
    %32 = vector.load %arg7[%c0_12, %c0_13] : memref<32x16xbf16, #tpu.memory_space<vmem>>, vector<32x16xbf16>
    %c0_14 = arith.constant 0 : index
    %c0_15 = arith.constant 0 : index
    %33 = vector.load %arg8[%c0_14, %c0_15] : memref<16x32xbf16, #tpu.memory_space<vmem>>, vector<16x32xbf16>
    %c0_16 = arith.constant 0 : index
    %c0_17 = arith.constant 0 : index
    %c0_18 = arith.constant 0 : index
    %34 = vector.load %arg9[%c0_16, %c0_17, %c0_18] : memref<1x16x32xf32, #tpu.memory_space<vmem>>, vector<1x16x32xf32>
    %35 = vector.shape_cast %34 : vector<1x16x32xf32> to vector<16x32xf32>
    %c0_19 = arith.constant 0 : index
    %c0_20 = arith.constant 0 : index
    %c0_21 = arith.constant 0 : index
    %36 = vector.load %arg10[%c0_19, %c0_20, %c0_21] : memref<1x16x32xf32, #tpu.memory_space<vmem>>, vector<1x16x32xf32>
    %37 = vector.shape_cast %36 : vector<1x16x32xf32> to vector<16x32xf32>
    %38 = vector.extract_strided_slice %31 {offsets = [0, 0, 0], sizes = [1, 16, 32], strides = [1, 1, 1]} : vector<2x16x32xbf16> to vector<1x16x32xbf16>
    %39 = vector.shape_cast %38 : vector<1x16x32xbf16> to vector<16x32xbf16>
    %cst_22 = arith.constant dense<0.000000e+00> : vector<32x32xf32>
    %40 = tpu.matmul %32, %39, %cst_22 {dimension_numbers = #tpu.dot_dimension_numbers<[1], [0], [0], [1], [0, 0, 1, 1], [], []>} : vector<32x16xbf16>, vector<16x32xbf16>, vector<32x32xf32> -> vector<32x32xf32>
    %41 = vector.extract_strided_slice %40 {offsets = [0, 0], sizes = [16, 32], strides = [1, 1]} : vector<32x32xf32> to vector<16x32xf32>
    %42 = vector.extract_strided_slice %40 {offsets = [16, 0], sizes = [16, 32], strides = [1, 1]} : vector<32x32xf32> to vector<16x32xf32>
    %43 = arith.mulf %41, %35 : vector<16x32xf32>
    %44 = arith.mulf %42, %37 : vector<16x32xf32>
    %45 = arith.subf %43, %44 : vector<16x32xf32>
    %46 = arith.mulf %41, %37 : vector<16x32xf32>
    %47 = arith.mulf %42, %35 : vector<16x32xf32>
    %48 = arith.addf %46, %47 : vector<16x32xf32>
    %49 = tpu.concatenate %45, %48 in 0 : vector<16x32xf32>, vector<16x32xf32> -> vector<32x32xf32>
    %50 = arith.truncf %49 : vector<32x32xf32> to vector<32x32xbf16>
    %cst_23 = arith.constant dense<0.000000e+00> : vector<16x32xf32>
    %51 = tpu.matmul %33, %50, %cst_23 {dimension_numbers = #tpu.dot_dimension_numbers<[1], [0], [0], [1], [0, 0, 1, 1], [], []>} : vector<16x32xbf16>, vector<32x32xbf16>, vector<16x32xf32> -> vector<16x32xf32>
    %52 = vector.extract_strided_slice %31 {offsets = [1, 0, 0], sizes = [1, 16, 32], strides = [1, 1, 1]} : vector<2x16x32xbf16> to vector<1x16x32xbf16>
    %53 = vector.shape_cast %52 : vector<1x16x32xbf16> to vector<16x32xbf16>
    %cst_24 = arith.constant dense<0.000000e+00> : vector<32x32xf32>
    %54 = tpu.matmul %32, %53, %cst_24 {dimension_numbers = #tpu.dot_dimension_numbers<[1], [0], [0], [1], [0, 0, 1, 1], [], []>} : vector<32x16xbf16>, vector<16x32xbf16>, vector<32x32xf32> -> vector<32x32xf32>
    %55 = vector.extract_strided_slice %54 {offsets = [0, 0], sizes = [16, 32], strides = [1, 1]} : vector<32x32xf32> to vector<16x32xf32>
    %56 = vector.extract_strided_slice %54 {offsets = [16, 0], sizes = [16, 32], strides = [1, 1]} : vector<32x32xf32> to vector<16x32xf32>
    %57 = arith.mulf %55, %35 : vector<16x32xf32>
    %58 = arith.mulf %56, %37 : vector<16x32xf32>
    %59 = arith.subf %57, %58 : vector<16x32xf32>
    %60 = arith.mulf %55, %37 : vector<16x32xf32>
    %61 = arith.mulf %56, %35 : vector<16x32xf32>
    %62 = arith.addf %60, %61 : vector<16x32xf32>
    %63 = tpu.concatenate %59, %62 in 0 : vector<16x32xf32>, vector<16x32xf32> -> vector<32x32xf32>
    %64 = arith.truncf %63 : vector<32x32xf32> to vector<32x32xbf16>
    %cst_25 = arith.constant dense<0.000000e+00> : vector<16x32xf32>
    %65 = tpu.matmul %33, %64, %cst_25 {dimension_numbers = #tpu.dot_dimension_numbers<[1], [0], [0], [1], [0, 0, 1, 1], [], []>} : vector<16x32xbf16>, vector<32x32xbf16>, vector<16x32xf32> -> vector<16x32xf32>
    %66 = tpu.concatenate %51, %65 in 0 : vector<16x32xf32>, vector<16x32xf32> -> vector<32x32xf32>
    %c0_26 = arith.constant 0 : index
    %c0_27 = arith.constant 0 : index
    %c0_28 = arith.constant 0 : index
    %67 = vector.load %arg11[%c0_26, %c0_27, %c0_28] : memref<1x1x32xf32, #tpu.memory_space<vmem>>, vector<1x1x32xf32>
    %68 = vector.shape_cast %67 : vector<1x1x32xf32> to vector<1x32xf32>
    %c0_29 = arith.constant 0 : index
    %c0_30 = arith.constant 0 : index
    %c0_31 = arith.constant 0 : index
    %69 = vector.load %arg12[%c0_29, %c0_30, %c0_31] : memref<1x1x32xf32, #tpu.memory_space<vmem>>, vector<1x1x32xf32>
    %70 = vector.shape_cast %69 : vector<1x1x32xf32> to vector<1x32xf32>
    %cst_32 = arith.constant dense<0.000000e+00> : vector<32xf32>
    %71 = vector.multi_reduction <add>, %66, %cst_32 [1] : vector<32x32xf32> to vector<32xf32>
    %72 = vector.shape_cast %71 : vector<32xf32> to vector<32x1xf32>
    %cst_33 = arith.constant 3.200000e+01 : f32
    %73 = vector.broadcast %cst_33 : f32 to vector<32x1xf32>
    %74 = arith.divf %72, %73 : vector<32x1xf32>
    %75 = vector.broadcast %74 : vector<32x1xf32> to vector<32x32xf32>
    %76 = arith.subf %66, %75 : vector<32x32xf32>
    %77 = arith.mulf %76, %76 : vector<32x32xf32>
    %cst_34 = arith.constant dense<0.000000e+00> : vector<32xf32>
    %78 = vector.multi_reduction <add>, %77, %cst_34 [1] : vector<32x32xf32> to vector<32xf32>
    %79 = vector.shape_cast %78 : vector<32xf32> to vector<32x1xf32>
    %cst_35 = arith.constant 3.200000e+01 : f32
    %80 = vector.broadcast %cst_35 : f32 to vector<32x1xf32>
    %81 = arith.divf %79, %80 : vector<32x1xf32>
    %82 = vector.broadcast %74 : vector<32x1xf32> to vector<32x32xf32>
    %83 = arith.subf %66, %82 : vector<32x32xf32>
    %cst_36 = arith.constant 9.99999974E-6 : f32
    %84 = vector.broadcast %cst_36 : f32 to vector<32x1xf32>
    %85 = arith.addf %81, %84 : vector<32x1xf32>
    %86 = math.rsqrt %85 : vector<32x1xf32>
    %87 = vector.broadcast %86 : vector<32x1xf32> to vector<32x32xf32>
    %88 = arith.mulf %83, %87 : vector<32x32xf32>
    %89 = vector.broadcast %68 : vector<1x32xf32> to vector<32x32xf32>
    %90 = arith.mulf %88, %89 : vector<32x32xf32>
    %91 = vector.broadcast %70 : vector<1x32xf32> to vector<32x32xf32>
    %92 = arith.addf %90, %91 : vector<32x32xf32>
    %93 = arith.truncf %92 : vector<32x32xf32> to vector<32x32xbf16>
    %c0_37 = arith.constant 0 : index
    %c0_38 = arith.constant 0 : index
    %c0_39 = arith.constant 0 : index
    %94 = vector.load %arg13[%c0_37, %c0_38, %c0_39] : memref<1x32x128xbf16, #tpu.memory_space<vmem>>, vector<1x32x128xbf16>
    %95 = vector.shape_cast %94 : vector<1x32x128xbf16> to vector<32x128xbf16>
    %cst_40 = arith.constant dense<0.000000e+00> : vector<32x128xf32>
    %96 = tpu.matmul %93, %95, %cst_40 {dimension_numbers = #tpu.dot_dimension_numbers<[1], [0], [0], [1], [0, 0, 1, 1], [], []>} : vector<32x32xbf16>, vector<32x128xbf16>, vector<32x128xf32> -> vector<32x128xf32>
    %c0_41 = arith.constant 0 : index
    %c0_42 = arith.constant 0 : index
    %c0_43 = arith.constant 0 : index
    %97 = vector.load %arg14[%c0_41, %c0_42, %c0_43] : memref<1x1x128xf32, #tpu.memory_space<vmem>>, vector<1x1x128xf32>
    %98 = vector.shape_cast %97 : vector<1x1x128xf32> to vector<1x128xf32>
    %99 = vector.broadcast %98 : vector<1x128xf32> to vector<32x128xf32>
    %100 = arith.addf %96, %99 : vector<32x128xf32>
    %cst_44 = arith.constant 5.000000e-01 : f32
    %101 = vector.broadcast %cst_44 : f32 to vector<32x128xf32>
    %102 = arith.mulf %101, %100 : vector<32x128xf32>
    %cst_45 = arith.constant 0.707106769 : f32
    %103 = vector.broadcast %cst_45 : f32 to vector<32x128xf32>
    %104 = arith.mulf %100, %103 : vector<32x128xf32>
    %cst_46 = arith.constant -4.000000e+00 : f32
    %cst_47 = arith.constant 4.000000e+00 : f32
    %105 = vector.broadcast %cst_46 : f32 to vector<32x128xf32>
    %106 = arith.maximumf %105, %104 : vector<32x128xf32>
    %107 = vector.broadcast %cst_47 : f32 to vector<32x128xf32>
    %108 = arith.minimumf %107, %106 : vector<32x128xf32>
    %109 = arith.mulf %108, %108 : vector<32x128xf32>
    %cst_48 = arith.constant -2.72614237E-10 : f32
    %110 = vector.broadcast %cst_48 : f32 to vector<32x128xf32>
    %111 = arith.mulf %109, %110 : vector<32x128xf32>
    %cst_49 = arith.constant 2.77068146E-8 : f32
    %112 = vector.broadcast %cst_49 : f32 to vector<32x128xf32>
    %113 = arith.addf %111, %112 : vector<32x128xf32>
    %114 = arith.mulf %109, %113 : vector<32x128xf32>
    %cst_50 = arith.constant -2.10102394E-6 : f32
    %115 = vector.broadcast %cst_50 : f32 to vector<32x128xf32>
    %116 = arith.addf %114, %115 : vector<32x128xf32>
    %117 = arith.mulf %109, %116 : vector<32x128xf32>
    %cst_51 = arith.constant -5.69250624E-5 : f32
    %118 = vector.broadcast %cst_51 : f32 to vector<32x128xf32>
    %119 = arith.addf %117, %118 : vector<32x128xf32>
    %120 = arith.mulf %109, %119 : vector<32x128xf32>
    %cst_52 = arith.constant -7.34990637E-4 : f32
    %121 = vector.broadcast %cst_52 : f32 to vector<32x128xf32>
    %122 = arith.addf %120, %121 : vector<32x128xf32>
    %123 = arith.mulf %109, %122 : vector<32x128xf32>
    %cst_53 = arith.constant -2.954600e-03 : f32
    %124 = vector.broadcast %cst_53 : f32 to vector<32x128xf32>
    %125 = arith.addf %123, %124 : vector<32x128xf32>
    %126 = arith.mulf %109, %125 : vector<32x128xf32>
    %cst_54 = arith.constant -0.0160960332 : f32
    %127 = vector.broadcast %cst_54 : f32 to vector<32x128xf32>
    %128 = arith.addf %126, %127 : vector<32x128xf32>
    %129 = arith.mulf %108, %128 : vector<32x128xf32>
    %cst_55 = arith.constant -1.45660715E-5 : f32
    %130 = vector.broadcast %cst_55 : f32 to vector<32x128xf32>
    %131 = arith.mulf %109, %130 : vector<32x128xf32>
    %cst_56 = arith.constant -2.13374049E-4 : f32
    %132 = vector.broadcast %cst_56 : f32 to vector<32x128xf32>
    %133 = arith.addf %131, %132 : vector<32x128xf32>
    %134 = arith.mulf %109, %133 : vector<32x128xf32>
    %cst_57 = arith.constant -0.00168282702 : f32
    %135 = vector.broadcast %cst_57 : f32 to vector<32x128xf32>
    %136 = arith.addf %134, %135 : vector<32x128xf32>
    %137 = arith.mulf %109, %136 : vector<32x128xf32>
    %cst_58 = arith.constant -0.00737332925 : f32
    %138 = vector.broadcast %cst_58 : f32 to vector<32x128xf32>
    %139 = arith.addf %137, %138 : vector<32x128xf32>
    %140 = arith.mulf %109, %139 : vector<32x128xf32>
    %cst_59 = arith.constant -0.0142647391 : f32
    %141 = vector.broadcast %cst_59 : f32 to vector<32x128xf32>
    %142 = arith.addf %140, %141 : vector<32x128xf32>
    %143 = arith.divf %129, %142 : vector<32x128xf32>
    %cst_60 = arith.constant 1.000000e+00 : f32
    %144 = vector.broadcast %cst_60 : f32 to vector<32x128xf32>
    %145 = arith.addf %144, %143 : vector<32x128xf32>
    %146 = arith.mulf %102, %145 : vector<32x128xf32>
    %147 = arith.truncf %146 : vector<32x128xf32> to vector<32x128xbf16>
    %c0_61 = arith.constant 0 : index
    %c0_62 = arith.constant 0 : index
    %c0_63 = arith.constant 0 : index
    %148 = vector.load %arg15[%c0_61, %c0_62, %c0_63] : memref<1x128x32xbf16, #tpu.memory_space<vmem>>, vector<1x128x32xbf16>
    %149 = vector.shape_cast %148 : vector<1x128x32xbf16> to vector<128x32xbf16>
    %cst_64 = arith.constant dense<0.000000e+00> : vector<32x32xf32>
    %150 = tpu.matmul %147, %149, %cst_64 {dimension_numbers = #tpu.dot_dimension_numbers<[1], [0], [0], [1], [0, 0, 1, 1], [], []>} : vector<32x128xbf16>, vector<128x32xbf16>, vector<32x32xf32> -> vector<32x32xf32>
    %c0_65 = arith.constant 0 : index
    %c0_66 = arith.constant 0 : index
    %c0_67 = arith.constant 0 : index
    %151 = vector.load %arg16[%c0_65, %c0_66, %c0_67] : memref<1x1x32xf32, #tpu.memory_space<vmem>>, vector<1x1x32xf32>
    %152 = vector.shape_cast %151 : vector<1x1x32xf32> to vector<1x32xf32>
    %153 = vector.broadcast %152 : vector<1x32xf32> to vector<32x32xf32>
    %154 = arith.addf %150, %153 : vector<32x32xf32>
    %155 = arith.addf %3, %154 : vector<32x32xf32>
    %c0_68 = arith.constant 0 : index
    %c0_69 = arith.constant 0 : index
    %156 = vector.load %arg22[%c0_68, %c0_69] : memref<32x32xf32, #tpu.memory_space<vmem>>, vector<32x32xf32>
    tpu.vector_store %arg22[%c0_68, %c0_69], %155 {strides = array<i32>} : memref<32x32xf32, #tpu.memory_space<vmem>>, vector<32x32xf32>,
    %c1_i32 = arith.constant 1 : i32
    %157 = arith.cmpi eq, %arg1, %c1_i32 : i32
    %158 = arith.extui %157 : i1 to i32
    %c0_i32_70 = arith.constant 0 : i32
    %159 = arith.cmpi ne, %158, %c0_i32_70 : i32
    scf.if %159 {
      %c0_71 = arith.constant 0 : index
      %c0_72 = arith.constant 0 : index
      %160 = vector.load %arg22[%c0_71, %c0_72] : memref<32x32xf32, #tpu.memory_space<vmem>>, vector<32x32xf32>
      %c0_73 = arith.constant 0 : index
      %c0_74 = arith.constant 0 : index
      %161 = vector.load %arg17[%c0_73, %c0_74] : memref<1x32xf32, #tpu.memory_space<vmem>>, vector<1x32xf32>
      %c0_75 = arith.constant 0 : index
      %c0_76 = arith.constant 0 : index
      %162 = vector.load %arg18[%c0_75, %c0_76] : memref<1x32xf32, #tpu.memory_space<vmem>>, vector<1x32xf32>
      %cst_77 = arith.constant dense<0.000000e+00> : vector<32xf32>
      %163 = vector.multi_reduction <add>, %160, %cst_77 [1] : vector<32x32xf32> to vector<32xf32>
      %164 = vector.shape_cast %163 : vector<32xf32> to vector<32x1xf32>
      %cst_78 = arith.constant 3.200000e+01 : f32
      %165 = vector.broadcast %cst_78 : f32 to vector<32x1xf32>
      %166 = arith.divf %164, %165 : vector<32x1xf32>
      %167 = vector.broadcast %166 : vector<32x1xf32> to vector<32x32xf32>
      %168 = arith.subf %160, %167 : vector<32x32xf32>
      %169 = arith.mulf %168, %168 : vector<32x32xf32>
      %cst_79 = arith.constant dense<0.000000e+00> : vector<32xf32>
      %170 = vector.multi_reduction <add>, %169, %cst_79 [1] : vector<32x32xf32> to vector<32xf32>
      %171 = vector.shape_cast %170 : vector<32xf32> to vector<32x1xf32>
      %cst_80 = arith.constant 3.200000e+01 : f32
      %172 = vector.broadcast %cst_80 : f32 to vector<32x1xf32>
      %173 = arith.divf %171, %172 : vector<32x1xf32>
      %174 = vector.broadcast %166 : vector<32x1xf32> to vector<32x32xf32>
      %175 = arith.subf %160, %174 : vector<32x32xf32>
      %cst_81 = arith.constant 9.99999974E-6 : f32
      %176 = vector.broadcast %cst_81 : f32 to vector<32x1xf32>
      %177 = arith.addf %173, %176 : vector<32x1xf32>
      %178 = math.rsqrt %177 : vector<32x1xf32>
      %179 = vector.broadcast %178 : vector<32x1xf32> to vector<32x32xf32>
      %180 = arith.mulf %175, %179 : vector<32x32xf32>
      %181 = vector.broadcast %161 : vector<1x32xf32> to vector<32x32xf32>
      %182 = arith.mulf %180, %181 : vector<32x32xf32>
      %183 = vector.broadcast %162 : vector<1x32xf32> to vector<32x32xf32>
      %184 = arith.addf %182, %183 : vector<32x32xf32>
      %185 = vector.shape_cast %184 : vector<32x32xf32> to vector<2x16x32xf32>
      %cst_82 = arith.constant dense<0.000000e+00> : vector<2x32xf32>
      %186 = vector.multi_reduction <add>, %185, %cst_82 [1] : vector<2x16x32xf32> to vector<2x32xf32>
      %cst_83 = arith.constant 1.600000e+01 : f32
      %187 = vector.broadcast %cst_83 : f32 to vector<2x32xf32>
      %188 = arith.divf %186, %187 : vector<2x32xf32>
      %c0_84 = arith.constant 0 : index
      %c0_85 = arith.constant 0 : index
      %189 = vector.load %arg19[%c0_84, %c0_85] : memref<32x10xf32, #tpu.memory_space<vmem>>, vector<32x10xf32>
      %cst_86 = arith.constant dense<0.000000e+00> : vector<2x10xf32>
      %190 = tpu.matmul %188, %189, %cst_86 {dimension_numbers = #tpu.dot_dimension_numbers<[1], [0], [0], [1], [0, 0, 1, 1], [], []>} : vector<2x32xf32>, vector<32x10xf32>, vector<2x10xf32> -> vector<2x10xf32>
      %c0_87 = arith.constant 0 : index
      %c0_88 = arith.constant 0 : index
      %191 = vector.load %arg20[%c0_87, %c0_88] : memref<1x10xf32, #tpu.memory_space<vmem>>, vector<1x10xf32>
      %192 = vector.broadcast %191 : vector<1x10xf32> to vector<2x10xf32>
      %193 = arith.addf %190, %192 : vector<2x10xf32>
      %c0_89 = arith.constant 0 : index
      %c0_90 = arith.constant 0 : index
      %194 = vector.load %arg21[%c0_89, %c0_90] : memref<2x10xf32, #tpu.memory_space<vmem>>, vector<2x10xf32>
      tpu.vector_store %arg21[%c0_89, %c0_90], %193 {strides = array<i32>} : memref<2x10xf32, #tpu.memory_space<vmem>>, vector<2x10xf32>,
    } else {
    }
    return
  }
  func.func @transform_0(%arg0: i32, %arg1: i32) -> (i32, i32, i32) {
    %c0_i32 = arith.constant 0 : i32
    %c0_i32_0 = arith.constant 0 : i32
    %c0_i32_1 = arith.constant 0 : i32
    return %arg0, %c0_i32, %c0_i32_0 : i32, i32, i32
  }
  func.func @transform_1(%arg0: i32, %arg1: i32) -> (i32, i32) {
    %c0_i32 = arith.constant 0 : i32
    %c0_i32_0 = arith.constant 0 : i32
    %c0_i32_1 = arith.constant 0 : i32
    return %c0_i32, %c0_i32_0 : i32, i32
  }
  func.func @transform_2(%arg0: i32, %arg1: i32) -> (i32, i32) {
    %c0_i32 = arith.constant 0 : i32
    %c0_i32_0 = arith.constant 0 : i32
    %c0_i32_1 = arith.constant 0 : i32
    return %c0_i32, %c0_i32_0 : i32, i32
  }
  func.func @transform_3(%arg0: i32, %arg1: i32) -> (i32, i32, i32) {
    %c0_i32 = arith.constant 0 : i32
    %c0_i32_0 = arith.constant 0 : i32
    %c0_i32_1 = arith.constant 0 : i32
    return %arg1, %c0_i32, %c0_i32_0 : i32, i32, i32
  }
  func.func @transform_4(%arg0: i32, %arg1: i32) -> (i32, i32, i32) {
    %c0_i32 = arith.constant 0 : i32
    %c0_i32_0 = arith.constant 0 : i32
    %c0_i32_1 = arith.constant 0 : i32
    return %arg1, %c0_i32, %c0_i32_0 : i32, i32, i32
  }
  func.func @transform_5(%arg0: i32, %arg1: i32) -> (i32, i32) {
    %c0_i32 = arith.constant 0 : i32
    %c0_i32_0 = arith.constant 0 : i32
    %c0_i32_1 = arith.constant 0 : i32
    return %c0_i32, %c0_i32_0 : i32, i32
  }
  func.func @transform_6(%arg0: i32, %arg1: i32) -> (i32, i32) {
    %c0_i32 = arith.constant 0 : i32
    %c0_i32_0 = arith.constant 0 : i32
    %c0_i32_1 = arith.constant 0 : i32
    return %c0_i32, %c0_i32_0 : i32, i32
  }
  func.func @transform_7(%arg0: i32, %arg1: i32) -> (i32, i32, i32) {
    %c0_i32 = arith.constant 0 : i32
    %c0_i32_0 = arith.constant 0 : i32
    %c0_i32_1 = arith.constant 0 : i32
    return %arg1, %c0_i32, %c0_i32_0 : i32, i32, i32
  }
  func.func @transform_8(%arg0: i32, %arg1: i32) -> (i32, i32, i32) {
    %c0_i32 = arith.constant 0 : i32
    %c0_i32_0 = arith.constant 0 : i32
    %c0_i32_1 = arith.constant 0 : i32
    return %arg1, %c0_i32, %c0_i32_0 : i32, i32, i32
  }
  func.func @transform_9(%arg0: i32, %arg1: i32) -> (i32, i32, i32) {
    %c0_i32 = arith.constant 0 : i32
    %c0_i32_0 = arith.constant 0 : i32
    %c0_i32_1 = arith.constant 0 : i32
    return %arg1, %c0_i32, %c0_i32_0 : i32, i32, i32
  }
  func.func @transform_10(%arg0: i32, %arg1: i32) -> (i32, i32, i32) {
    %c0_i32 = arith.constant 0 : i32
    %c0_i32_0 = arith.constant 0 : i32
    %c0_i32_1 = arith.constant 0 : i32
    return %arg1, %c0_i32, %c0_i32_0 : i32, i32, i32
  }
  func.func @transform_11(%arg0: i32, %arg1: i32) -> (i32, i32, i32) {
    %c0_i32 = arith.constant 0 : i32
    %c0_i32_0 = arith.constant 0 : i32
    %c0_i32_1 = arith.constant 0 : i32
    return %arg1, %c0_i32, %c0_i32_0 : i32, i32, i32
  }
  func.func @transform_12(%arg0: i32, %arg1: i32) -> (i32, i32, i32) {
    %c0_i32 = arith.constant 0 : i32
    %c0_i32_0 = arith.constant 0 : i32
    %c0_i32_1 = arith.constant 0 : i32
    return %arg1, %c0_i32, %c0_i32_0 : i32, i32, i32
  }
  func.func @transform_13(%arg0: i32, %arg1: i32) -> (i32, i32, i32) {
    %c0_i32 = arith.constant 0 : i32
    %c0_i32_0 = arith.constant 0 : i32
    %c0_i32_1 = arith.constant 0 : i32
    return %arg1, %c0_i32, %c0_i32_0 : i32, i32, i32
  }
  func.func @transform_14(%arg0: i32, %arg1: i32) -> (i32, i32, i32) {
    %c0_i32 = arith.constant 0 : i32
    %c0_i32_0 = arith.constant 0 : i32
    %c0_i32_1 = arith.constant 0 : i32
    return %arg1, %c0_i32, %c0_i32_0 : i32, i32, i32
  }
  func.func @transform_15(%arg0: i32, %arg1: i32) -> (i32, i32) {
    %c0_i32 = arith.constant 0 : i32
    %c0_i32_0 = arith.constant 0 : i32
    %c0_i32_1 = arith.constant 0 : i32
    return %c0_i32, %c0_i32_0 : i32, i32
  }
  func.func @transform_16(%arg0: i32, %arg1: i32) -> (i32, i32) {
    %c0_i32 = arith.constant 0 : i32
    %c0_i32_0 = arith.constant 0 : i32
    %c0_i32_1 = arith.constant 0 : i32
    return %c0_i32, %c0_i32_0 : i32, i32
  }
  func.func @transform_17(%arg0: i32, %arg1: i32) -> (i32, i32) {
    %c0_i32 = arith.constant 0 : i32
    %c0_i32_0 = arith.constant 0 : i32
    %c0_i32_1 = arith.constant 0 : i32
    return %c0_i32, %c0_i32_0 : i32, i32
  }
  func.func @transform_18(%arg0: i32, %arg1: i32) -> (i32, i32) {
    %c0_i32 = arith.constant 0 : i32
    %c0_i32_0 = arith.constant 0 : i32
    %c0_i32_1 = arith.constant 0 : i32
    return %c0_i32, %c0_i32_0 : i32, i32
  }
  func.func @transform_19(%arg0: i32, %arg1: i32) -> (i32, i32) {
    %c0_i32 = arith.constant 0 : i32
    %c0_i32_0 = arith.constant 0 : i32
    return %arg0, %c0_i32 : i32, i32
  }
}

</mosaic_0001>

<llo_original>
// kernel: tpu_custom_call.1
$region0: #{tpu_custom_call.1}
  #allocation0 [shape = 'u32[]', space=smem, size = 0x4, offset = 0x4, fixed_abs, tag = 'smem constant byte address 0x4 - core index']
  #allocation1 [shape = 'u32[144,128]{1,0:T(1,128)}', space=vmem, size = 0x12000, scoped, tag = 'internal scratch']
  #allocation2 [shape = 'f32[32,32]{1,0:T(8,128)}', space=vmem, size = 0x4000, scoped, tag = 'scratch operand']
  %s0 = inlined_call_operand.hbm [shape: bf16[2,16,48], index: 0, kind: input, shape index: {}]
  %s1 = inlined_call_operand.hbm [shape: bf16[48,32], index: 1, kind: input, shape index: {}]
  %s2 = inlined_call_operand.hbm [shape: f32[16,32], index: 2, kind: input, shape index: {}]
  %s3 = inlined_call_operand.hbm [shape: f32[2,1,32], index: 3, kind: input, shape index: {}]
  %s4 = inlined_call_operand.hbm [shape: f32[2,1,32], index: 4, kind: input, shape index: {}]
  %s5 = inlined_call_operand.hbm [shape: bf16[32,16], index: 5, kind: input, shape index: {}]
  %s6 = inlined_call_operand.hbm [shape: bf16[16,32], index: 6, kind: input, shape index: {}]
  %s7 = inlined_call_operand.hbm [shape: f32[2,16,32], index: 7, kind: input, shape index: {}]
  %s8 = inlined_call_operand.hbm [shape: f32[2,16,32], index: 8, kind: input, shape index: {}]
  %s9 = inlined_call_operand.hbm [shape: f32[2,1,32], index: 9, kind: input, shape index: {}]
  %s10 = inlined_call_operand.hbm [shape: f32[2,1,32], index: 10, kind: input, shape index: {}]
  %s11 = inlined_call_operand.hbm [shape: bf16[2,32,128], index: 11, kind: input, shape index: {}]
  %s12 = inlined_call_operand.hbm [shape: f32[2,1,128], index: 12, kind: input, shape index: {}]
  %s13 = inlined_call_operand.hbm [shape: bf16[2,128,32], index: 13, kind: input, shape index: {}]
  %s14 = inlined_call_operand.hbm [shape: f32[2,1,32], index: 14, kind: input, shape index: {}]
  %s15 = inlined_call_operand.hbm [shape: f32[1,32], index: 15, kind: input, shape index: {}]
  %s16 = inlined_call_operand.hbm [shape: f32[1,32], index: 16, kind: input, shape index: {}]
  %s17 = inlined_call_operand.hbm [shape: f32[32,10], index: 17, kind: input, shape index: {}]
  %s18 = inlined_call_operand.hbm [shape: f32[1,10], index: 18, kind: input, shape index: {}]
  %s19 = inlined_call_operand.hbm [shape: f32[2,10], index: 19, kind: output, shape index: {}]
  %s20 = sld [smem:[#allocation0]]
  $region193: #{tpu_custom_call.1} parent=0
    _
  %s22 = ssub.s32 1, %s20
  %s23 = scalar_select 0, %s22, %s20
  $region1: #{tpu_custom_call.1} parent=0
    #allocation3 [shape = 'u8[8192]{0}', space=vmem, size = 0x2000, scoped, tag = 'input window, operand 0, single buffered']
    #allocation4 [shape = 's32[2]{0}', space=sflag, size = 0x8, scoped, tag = 'scoped memory for tpu_custom_call.1']
    #allocation5 [shape = 's32[2]{0}', space=sflag, size = 0x8, scoped, tag = 'scoped memory for tpu_custom_call.1']
    #allocation6 [shape = 'u8[12288]{0}', space=vmem, size = 0x3000, scoped, tag = 'input window, operand 1, single buffered']
    #allocation7 [shape = 's32[1]{0}', space=sflag, size = 0x4, scoped, tag = 'scoped memory for tpu_custom_call.1']
    #allocation8 [shape = 'u8[8192]{0}', space=vmem, size = 0x2000, scoped, tag = 'input window, operand 2, single buffered']
    #allocation9 [shape = 'u8[1024]{0}', space=vmem, size = 0x400, scoped, tag = 'input window, operand 3']
    #allocation10 [shape = 's32[2]{0}', space=sflag, size = 0x8, scoped, tag = 'scoped memory for tpu_custom_call.1']
    #allocation11 [shape = 'u8[1024]{0}', space=vmem, size = 0x400, scoped, tag = 'input window, operand 4']
    #allocation12 [shape = 'u8[8192]{0}', space=vmem, size = 0x2000, scoped, tag = 'input window, operand 5, single buffered']
    #allocation13 [shape = 's32[1]{0}', space=sflag, size = 0x4, scoped, tag = 'scoped memory for tpu_custom_call.1']
    #allocation14 [shape = 'u8[4096]{0}', space=vmem, size = 0x1000, scoped, tag = 'input window, operand 6, single buffered']
    #allocation15 [shape = 'u8[16384]{0}', space=vmem, size = 0x4000, scoped, tag = 'input window, operand 7']
    #allocation16 [shape = 's32[2]{0}', space=sflag, size = 0x8, scoped, tag = 'scoped memory for tpu_custom_call.1']
    #allocation17 [shape = 'u8[16384]{0}', space=vmem, size = 0x4000, scoped, tag = 'input window, operand 8']
    #allocation18 [shape = 'u8[1024]{0}', space=vmem, size = 0x400, scoped, tag = 'input window, operand 9']
    #allocation19 [shape = 's32[2]{0}', space=sflag, size = 0x8, scoped, tag = 'scoped memory for tpu_custom_call.1']
    #allocation20 [shape = 'u8[1024]{0}', space=vmem, size = 0x400, scoped, tag = 'input window, operand 10']
    #allocation21 [shape = 'u8[16384]{0}', space=vmem, size = 0x4000, scoped, tag = 'input window, operand 11']
    #allocation22 [shape = 's32[2]{0}', space=sflag, size = 0x8, scoped, tag = 'scoped memory for tpu_custom_call.1']
    #allocation23 [shape = 'u8[1024]{0}', space=vmem, size = 0x400, scoped, tag = 'input window, operand 12']
    #allocation24 [shape = 'u8[65536]{0}', space=vmem, size = 0x10000, scoped, tag = 'input window, operand 13']
    #allocation25 [shape = 's32[2]{0}', space=sflag, size = 0x8, scoped, tag = 'scoped memory for tpu_custom_call.1']
    #allocation26 [shape = 'u8[1024]{0}', space=vmem, size = 0x400, scoped, tag = 'input window, operand 14']
    #allocation27 [shape = 'u8[512]{0}', space=vmem, size = 0x400, scoped, tag = 'input window, operand 15, single buffered']
    #allocation28 [shape = 's32[1]{0}', space=sflag, size = 0x4, scoped, tag = 'scoped memory for tpu_custom_call.1']
    #allocation29 [shape = 'u8[512]{0}', space=vmem, size = 0x400, scoped, tag = 'input window, operand 16, single buffered']
    #allocation30 [shape = 'u8[16384]{0}', space=vmem, size = 0x4000, scoped, tag = 'input window, operand 17, single buffered']
    #allocation31 [shape = 's32[1]{0}', space=sflag, size = 0x4, scoped, tag = 'scoped memory for tpu_custom_call.1']
    #allocation32 [shape = 'u8[512]{0}', space=vmem, size = 0x400, scoped, tag = 'input window, operand 18, single buffered']
    #allocation33 [shape = 'u8[1024]{0}', space=vmem, size = 0x400, scoped, tag = 'output window, operand 0, single buffered']
    %24 = vsyncpa [#allocation4], 0
    %25 = vsyncpa [#allocation7], 0
    %26 = vsyncpa [#allocation10], 0
    %s27 = scalar_lea.sflag [#allocation10], 1
    %28 = vsyncpa %s27, 0
    %29 = vsyncpa [#allocation13], 0
    %30 = vsyncpa [#allocation16], 0
    %s31 = scalar_lea.sflag [#allocation16], 1
    %32 = vsyncpa %s31, 0
    %33 = vsyncpa [#allocation19], 0
    %s34 = scalar_lea.sflag [#allocation19], 1
    %35 = vsyncpa %s34, 0
    %36 = vsyncpa [#allocation22], 0
    %s37 = scalar_lea.sflag [#allocation22], 1
    %38 = vsyncpa %s37, 0
    %39 = vsyncpa [#allocation25], 0
    %s40 = scalar_lea.sflag [#allocation25], 1
    %41 = vsyncpa %s40, 0
    %42 = vsyncpa [#allocation28], 0
    %43 = vsyncpa [#allocation31], 0
    %44 = vsyncpa [#allocation5], 0
    loop: start=0, step=1, limit=4
    $region2: #{tpu_custom_call.1} parent=1 // loop_pre_header
      _
    $region3: #{tpu_custom_call.1} parent=1 // loop_header
      %s46 = sphi 0, %s50
      %p47 = scmp.ge.s32.totalorder %s46, 4
      %s53 = sphi 0, %s65
      %s54 = sphi 0, %s61
      %s55 = sphi 0, %s53
      %s56 = sphi 0, %s54
      %s57 = sphi 0, %s55
      %s58 = sphi 0, %s56
      %s68 = sphi 0, %s70
      %s71 = sphi 0, %s68
      %s72 = sphi 0, %s71
      %s88 = sphi 0, %s72
      %s92 = sphi 0, %s92
      %s94 = sphi 0, %s92
      %s95 = sphi 0, %s94
      %s109 = sphi 0, %s95
      %s113 = sphi 0, %s113
      %s115 = sphi 0, %s113
      %s116 = sphi 0, %s115
      %s130 = sphi 0, %s116
      %s136 = sphi 0, %s138
      %s139 = sphi 0, %s136
      %s140 = sphi 0, %s139
      %s156 = sphi 0, %s140
      %s162 = sphi 0, %s164
      %s165 = sphi 0, %s162
      %s166 = sphi 0, %s165
      %s182 = sphi 0, %s166
      %s186 = sphi 0, %s186
      %s188 = sphi 0, %s186
      %s189 = sphi 0, %s188
      %s203 = sphi 0, %s189
      %s207 = sphi 0, %s207
      %s209 = sphi 0, %s207
      %s210 = sphi 0, %s209
      %s224 = sphi 0, %s210
      %s230 = sphi 0, %s232
      %s233 = sphi 0, %s230
      %s234 = sphi 0, %s233
      %s250 = sphi 0, %s234
      %s256 = sphi 0, %s258
      %s259 = sphi 0, %s256
      %s260 = sphi 0, %s259
      %s276 = sphi 0, %s260
      %s282 = sphi 0, %s284
      %s285 = sphi 0, %s282
      %s286 = sphi 0, %s285
      %s302 = sphi 0, %s286
      %s308 = sphi 0, %s310
      %s311 = sphi 0, %s308
      %s312 = sphi 0, %s311
      %s328 = sphi 0, %s312
      %s334 = sphi 0, %s336
      %s337 = sphi 0, %s334
      %s338 = sphi 0, %s337
      %s354 = sphi 0, %s338
      %s360 = sphi 0, %s362
      %s363 = sphi 0, %s360
      %s364 = sphi 0, %s363
      %s380 = sphi 0, %s364
      %s386 = sphi 0, %s388
      %s389 = sphi 0, %s386
      %s390 = sphi 0, %s389
      %s406 = sphi 0, %s390
      %s412 = sphi 0, %s414
      %s415 = sphi 0, %s412
      %s416 = sphi 0, %s415
      %s432 = sphi 0, %s416
      %s436 = sphi 0, %s436
      %s438 = sphi 0, %s436
      %s439 = sphi 0, %s438
      %s453 = sphi 0, %s439
      %s457 = sphi 0, %s457
      %s459 = sphi 0, %s457
      %s460 = sphi 0, %s459
      %s474 = sphi 0, %s460
      %s478 = sphi 0, %s478
      %s480 = sphi 0, %s478
      %s481 = sphi 0, %s480
      %s495 = sphi 0, %s481
      %s499 = sphi 0, %s499
      %s501 = sphi 0, %s499
      %s502 = sphi 0, %s501
      %s516 = sphi 0, %s502
      %s522 = sphi 0, %s524
      %s525 = sphi 0, %s522
      %s526 = sphi 0, %s525
      %s542 = sphi 0, %s526
    $region4: #{tpu_custom_call.1} parent=1 // loop_header_branch
      %49 = sbr.rel (%p47) target = $region8
    $region5: #{tpu_custom_call.1} parent=1 // loop_body
      %s51 = ssub.s32 %s46, 1
      %s52 = ssub.s32 %s46, 2
      %s59 = sadd.s32 1, %s54
      %p60 = scmp.ge.s32.totalorder %s59, 2
      %s61 = scalar_select %p60, 0, %s59
      %s62 = sadd.s32 1, %s53
      %s63 = scalar_select %p60, %s62, %s53
      %p64 = scmp.ge.s32.totalorder %s63, 1
      %s65 = scalar_select %p64, 0, %s63
      %s66 = ssub.s32 %s53, %s65
      %p67 = scmp.eq.s32.totalorder %s66, 0
      %s69 = sadd.s32 %s68, 1
      %s70 = scalar_select %p67, %s68, %s69
      %p73 = pneg %p67
      %p74 = scmp.eq.s32.totalorder %s46, 1
      %p75 = por %p73, %p74
      %p76 = scmp.ne.s32.totalorder %s68, %s71
      %p77 = scmp.eq.s32.totalorder %s46, 0
      %p78 = por %p76, %p77
      %p79 = scmp.ne.s32.totalorder %s68, %s71
      %p80 = scmp.eq.s32.totalorder %s51, 1
      %p81 = por %p79, %p80
      %p82 = scmp.ne.s32.totalorder %s71, %s72
      %p83 = scmp.eq.s32.totalorder %s51, 0
      %p84 = por %p82, %p83
      %p85 = scmp.ne.s32.totalorder %s71, %s72
      %p86 = scmp.eq.s32.totalorder %s52, 1
      %p87 = por %p85, %p86
      %p89 = scmp.ne.s32.totalorder %s72, %s88
      %p90 = scmp.eq.s32.totalorder %s52, 0
      %p91 = por %p89, %p90
      %s93 = sadd.s32 %s92, 1
      %p96 = scmp.eq.s32.totalorder %s46, 1
      %p97 = scmp.ne.s32.totalorder %s92, %s94
      %p98 = scmp.eq.s32.totalorder %s46, 0
      %p99 = por %p97, %p98
      %p100 = scmp.ne.s32.totalorder %s92, %s94
      %p101 = scmp.eq.s32.totalorder %s51, 1
      %p102 = por %p100, %p101
      %p103 = scmp.ne.s32.totalorder %s94, %s95
      %p104 = scmp.eq.s32.totalorder %s51, 0
      %p105 = por %p103, %p104
      %p106 = scmp.ne.s32.totalorder %s94, %s95
      %p107 = scmp.eq.s32.totalorder %s52, 1
      %p108 = por %p106, %p107
      %p110 = scmp.ne.s32.totalorder %s95, %s109
      %p111 = scmp.eq.s32.totalorder %s52, 0
      %p112 = por %p110, %p111
      %s114 = sadd.s32 %s113, 1
      %p117 = scmp.eq.s32.totalorder %s46, 1
      %p118 = scmp.ne.s32.totalorder %s113, %s115
      %p119 = scmp.eq.s32.totalorder %s46, 0
      %p120 = por %p118, %p119
      %p121 = scmp.ne.s32.totalorder %s113, %s115
      %p122 = scmp.eq.s32.totalorder %s51, 1
      %p123 = por %p121, %p122
      %p124 = scmp.ne.s32.totalorder %s115, %s116
      %p125 = scmp.eq.s32.totalorder %s51, 0
      %p126 = por %p124, %p125
      %p127 = scmp.ne.s32.totalorder %s115, %s116
      %p128 = scmp.eq.s32.totalorder %s52, 1
      %p129 = por %p127, %p128
      %p131 = scmp.ne.s32.totalorder %s116, %s130
      %p132 = scmp.eq.s32.totalorder %s52, 0
      %p133 = por %p131, %p132
      %s134 = ssub.s32 %s54, %s61
      %p135 = scmp.eq.s32.totalorder %s134, 0
      %s137 = sadd.s32 %s136, 1
      %s138 = scalar_select %p135, %s136, %s137
      %p141 = pneg %p135
      %p142 = scmp.eq.s32.totalorder %s46, 1
      %p143 = por %p141, %p142
      %p144 = scmp.ne.s32.totalorder %s136, %s139
      %p145 = scmp.eq.s32.totalorder %s46, 0
      %p146 = por %p144, %p145
      %p147 = scmp.ne.s32.totalorder %s136, %s139
      %p148 = scmp.eq.s32.totalorder %s51, 1
      %p149 = por %p147, %p148
      %p150 = scmp.ne.s32.totalorder %s139, %s140
      %p151 = scmp.eq.s32.totalorder %s51, 0
      %p152 = por %p150, %p151
      %p153 = scmp.ne.s32.totalorder %s139, %s140
      %p154 = scmp.eq.s32.totalorder %s52, 1
      %p155 = por %p153, %p154
      %p157 = scmp.ne.s32.totalorder %s140, %s156
      %p158 = scmp.eq.s32.totalorder %s52, 0
      %p159 = por %p157, %p158
      %s160 = ssub.s32 %s54, %s61
      %p161 = scmp.eq.s32.totalorder %s160, 0
      %s163 = sadd.s32 %s162, 1
      %s164 = scalar_select %p161, %s162, %s163
      %p167 = pneg %p161
      %p168 = scmp.eq.s32.totalorder %s46, 1
      %p169 = por %p167, %p168
      %p170 = scmp.ne.s32.totalorder %s162, %s165
      %p171 = scmp.eq.s32.totalorder %s46, 0
      %p172 = por %p170, %p171
      %p173 = scmp.ne.s32.totalorder %s162, %s165
      %p174 = scmp.eq.s32.totalorder %s51, 1
      %p175 = por %p173, %p174
      %p176 = scmp.ne.s32.totalorder %s165, %s166
      %p177 = scmp.eq.s32.totalorder %s51, 0
      %p178 = por %p176, %p177
      %p179 = scmp.ne.s32.totalorder %s165, %s166
      %p180 = scmp.eq.s32.totalorder %s52, 1
      %p181 = por %p179, %p180
      %p183 = scmp.ne.s32.totalorder %s166, %s182
      %p184 = scmp.eq.s32.totalorder %s52, 0
      %p185 = por %p183, %p184
      %s187 = sadd.s32 %s186, 1
      %p190 = scmp.eq.s32.totalorder %s46, 1
      %p191 = scmp.ne.s32.totalorder %s186, %s188
      %p192 = scmp.eq.s32.totalorder %s46, 0
      %p193 = por %p191, %p192
      %p194 = scmp.ne.s32.totalorder %s186, %s188
      %p195 = scmp.eq.s32.totalorder %s51, 1
      %p196 = por %p194, %p195
      %p197 = scmp.ne.s32.totalorder %s188, %s189
      %p198 = scmp.eq.s32.totalorder %s51, 0
      %p199 = por %p197, %p198
      %p200 = scmp.ne.s32.totalorder %s188, %s189
      %p201 = scmp.eq.s32.totalorder %s52, 1
      %p202 = por %p200, %p201
      %p204 = scmp.ne.s32.totalorder %s189, %s203
      %p205 = scmp.eq.s32.totalorder %s52, 0
      %p206 = por %p204, %p205
      %s208 = sadd.s32 %s207, 1
      %p211 = scmp.eq.s32.totalorder %s46, 1
      %p212 = scmp.ne.s32.totalorder %s207, %s209
      %p213 = scmp.eq.s32.totalorder %s46, 0
      %p214 = por %p212, %p213
      %p215 = scmp.ne.s32.totalorder %s207, %s209
      %p216 = scmp.eq.s32.totalorder %s51, 1
      %p217 = por %p215, %p216
      %p218 = scmp.ne.s32.totalorder %s209, %s210
      %p219 = scmp.eq.s32.totalorder %s51, 0
      %p220 = por %p218, %p219
      %p221 = scmp.ne.s32.totalorder %s209, %s210
      %p222 = scmp.eq.s32.totalorder %s52, 1
      %p223 = por %p221, %p222
      %p225 = scmp.ne.s32.totalorder %s210, %s224
      %p226 = scmp.eq.s32.totalorder %s52, 0
      %p227 = por %p225, %p226
      %s228 = ssub.s32 %s54, %s61
      %p229 = scmp.eq.s32.totalorder %s228, 0
      %s231 = sadd.s32 %s230, 1
      %s232 = scalar_select %p229, %s230, %s231
      %p235 = pneg %p229
      %p236 = scmp.eq.s32.totalorder %s46, 1
      %p237 = por %p235, %p236
      %p238 = scmp.ne.s32.totalorder %s230, %s233
      %p239 = scmp.eq.s32.totalorder %s46, 0
      %p240 = por %p238, %p239
      %p241 = scmp.ne.s32.totalorder %s230, %s233
      %p242 = scmp.eq.s32.totalorder %s51, 1
      %p243 = por %p241, %p242
      %p244 = scmp.ne.s32.totalorder %s233, %s234
      %p245 = scmp.eq.s32.totalorder %s51, 0
      %p246 = por %p244, %p245
      %p247 = scmp.ne.s32.totalorder %s233, %s234
      %p248 = scmp.eq.s32.totalorder %s52, 1
      %p249 = por %p247, %p248
      %p251 = scmp.ne.s32.totalorder %s234, %s250
      %p252 = scmp.eq.s32.totalorder %s52, 0
      %p253 = por %p251, %p252
      %s254 = ssub.s32 %s54, %s61
      %p255 = scmp.eq.s32.totalorder %s254, 0
      %s257 = sadd.s32 %s256, 1
      %s258 = scalar_select %p255, %s256, %s257
      %p261 = pneg %p255
      %p262 = scmp.eq.s32.totalorder %s46, 1
      %p263 = por %p261, %p262
      %p264 = scmp.ne.s32.totalorder %s256, %s259
      %p265 = scmp.eq.s32.totalorder %s46, 0
      %p266 = por %p264, %p265
      %p267 = scmp.ne.s32.totalorder %s256, %s259
      %p268 = scmp.eq.s32.totalorder %s51, 1
      %p269 = por %p267, %p268
      %p270 = scmp.ne.s32.totalorder %s259, %s260
      %p271 = scmp.eq.s32.totalorder %s51, 0
      %p272 = por %p270, %p271
      %p273 = scmp.ne.s32.totalorder %s259, %s260
      %p274 = scmp.eq.s32.totalorder %s52, 1
      %p275 = por %p273, %p274
      %p277 = scmp.ne.s32.totalorder %s260, %s276
      %p278 = scmp.eq.s32.totalorder %s52, 0
      %p279 = por %p277, %p278
      %s280 = ssub.s32 %s54, %s61
      %p281 = scmp.eq.s32.totalorder %s280, 0
      %s283 = sadd.s32 %s282, 1
      %s284 = scalar_select %p281, %s282, %s283
      %p287 = pneg %p281
      %p288 = scmp.eq.s32.totalorder %s46, 1
      %p289 = por %p287, %p288
      %p290 = scmp.ne.s32.totalorder %s282, %s285
      %p291 = scmp.eq.s32.totalorder %s46, 0
      %p292 = por %p290, %p291
      %p293 = scmp.ne.s32.totalorder %s282, %s285
      %p294 = scmp.eq.s32.totalorder %s51, 1
      %p295 = por %p293, %p294
      %p296 = scmp.ne.s32.totalorder %s285, %s286
      %p297 = scmp.eq.s32.totalorder %s51, 0
      %p298 = por %p296, %p297
      %p299 = scmp.ne.s32.totalorder %s285, %s286
      %p300 = scmp.eq.s32.totalorder %s52, 1
      %p301 = por %p299, %p300
      %p303 = scmp.ne.s32.totalorder %s286, %s302
      %p304 = scmp.eq.s32.totalorder %s52, 0
      %p305 = por %p303, %p304
      %s306 = ssub.s32 %s54, %s61
      %p307 = scmp.eq.s32.totalorder %s306, 0
      %s309 = sadd.s32 %s308, 1
      %s310 = scalar_select %p307, %s308, %s309
      %p313 = pneg %p307
      %p314 = scmp.eq.s32.totalorder %s46, 1
      %p315 = por %p313, %p314
      %p316 = scmp.ne.s32.totalorder %s308, %s311
      %p317 = scmp.eq.s32.totalorder %s46, 0
      %p318 = por %p316, %p317
      %p319 = scmp.ne.s32.totalorder %s308, %s311
      %p320 = scmp.eq.s32.totalorder %s51, 1
      %p321 = por %p319, %p320
      %p322 = scmp.ne.s32.totalorder %s311, %s312
      %p323 = scmp.eq.s32.totalorder %s51, 0
      %p324 = por %p322, %p323
      %p325 = scmp.ne.s32.totalorder %s311, %s312
      %p326 = scmp.eq.s32.totalorder %s52, 1
      %p327 = por %p325, %p326
      %p329 = scmp.ne.s32.totalorder %s312, %s328
      %p330 = scmp.eq.s32.totalorder %s52, 0
      %p331 = por %p329, %p330
      %s332 = ssub.s32 %s54, %s61
      %p333 = scmp.eq.s32.totalorder %s332, 0
      %s335 = sadd.s32 %s334, 1
      %s336 = scalar_select %p333, %s334, %s335
      %p339 = pneg %p333
      %p340 = scmp.eq.s32.totalorder %s46, 1
      %p341 = por %p339, %p340
      %p342 = scmp.ne.s32.totalorder %s334, %s337
      %p343 = scmp.eq.s32.totalorder %s46, 0
      %p344 = por %p342, %p343
      %p345 = scmp.ne.s32.totalorder %s334, %s337
      %p346 = scmp.eq.s32.totalorder %s51, 1
      %p347 = por %p345, %p346
      %p348 = scmp.ne.s32.totalorder %s337, %s338
      %p349 = scmp.eq.s32.totalorder %s51, 0
      %p350 = por %p348, %p349
      %p351 = scmp.ne.s32.totalorder %s337, %s338
      %p352 = scmp.eq.s32.totalorder %s52, 1
      %p353 = por %p351, %p352
      %p355 = scmp.ne.s32.totalorder %s338, %s354
      %p356 = scmp.eq.s32.totalorder %s52, 0
      %p357 = por %p355, %p356
      %s358 = ssub.s32 %s54, %s61
      %p359 = scmp.eq.s32.totalorder %s358, 0
      %s361 = sadd.s32 %s360, 1
      %s362 = scalar_select %p359, %s360, %s361
      %p365 = pneg %p359
      %p366 = scmp.eq.s32.totalorder %s46, 1
      %p367 = por %p365, %p366
      %p368 = scmp.ne.s32.totalorder %s360, %s363
      %p369 = scmp.eq.s32.totalorder %s46, 0
      %p370 = por %p368, %p369
      %p371 = scmp.ne.s32.totalorder %s360, %s363
      %p372 = scmp.eq.s32.totalorder %s51, 1
      %p373 = por %p371, %p372
      %p374 = scmp.ne.s32.totalorder %s363, %s364
      %p375 = scmp.eq.s32.totalorder %s51, 0
      %p376 = por %p374, %p375
      %p377 = scmp.ne.s32.totalorder %s363, %s364
      %p378 = scmp.eq.s32.totalorder %s52, 1
      %p379 = por %p377, %p378
      %p381 = scmp.ne.s32.totalorder %s364, %s380
      %p382 = scmp.eq.s32.totalorder %s52, 0
      %p383 = por %p381, %p382
      %s384 = ssub.s32 %s54, %s61
      %p385 = scmp.eq.s32.totalorder %s384, 0
      %s387 = sadd.s32 %s386, 1
      %s388 = scalar_select %p385, %s386, %s387
      %p391 = pneg %p385
      %p392 = scmp.eq.s32.totalorder %s46, 1
      %p393 = por %p391, %p392
      %p394 = scmp.ne.s32.totalorder %s386, %s389
      %p395 = scmp.eq.s32.totalorder %s46, 0
      %p396 = por %p394, %p395
      %p397 = scmp.ne.s32.totalorder %s386, %s389
      %p398 = scmp.eq.s32.totalorder %s51, 1
      %p399 = por %p397, %p398
      %p400 = scmp.ne.s32.totalorder %s389, %s390
      %p401 = scmp.eq.s32.totalorder %s51, 0
      %p402 = por %p400, %p401
      %p403 = scmp.ne.s32.totalorder %s389, %s390
      %p404 = scmp.eq.s32.totalorder %s52, 1
      %p405 = por %p403, %p404
      %p407 = scmp.ne.s32.totalorder %s390, %s406
      %p408 = scmp.eq.s32.totalorder %s52, 0
      %p409 = por %p407, %p408
      %s410 = ssub.s32 %s54, %s61
      %p411 = scmp.eq.s32.totalorder %s410, 0
      %s413 = sadd.s32 %s412, 1
      %s414 = scalar_select %p411, %s412, %s413
      %p417 = pneg %p411
      %p418 = scmp.eq.s32.totalorder %s46, 1
      %p419 = por %p417, %p418
      %p420 = scmp.ne.s32.totalorder %s412, %s415
      %p421 = scmp.eq.s32.totalorder %s46, 0
      %p422 = por %p420, %p421
      %p423 = scmp.ne.s32.totalorder %s412, %s415
      %p424 = scmp.eq.s32.totalorder %s51, 1
      %p425 = por %p423, %p424
      %p426 = scmp.ne.s32.totalorder %s415, %s416
      %p427 = scmp.eq.s32.totalorder %s51, 0
      %p428 = por %p426, %p427
      %p429 = scmp.ne.s32.totalorder %s415, %s416
      %p430 = scmp.eq.s32.totalorder %s52, 1
      %p431 = por %p429, %p430
      %p433 = scmp.ne.s32.totalorder %s416, %s432
      %p434 = scmp.eq.s32.totalorder %s52, 0
      %p435 = por %p433, %p434
      %s437 = sadd.s32 %s436, 1
      %p440 = scmp.eq.s32.totalorder %s46, 1
      %p441 = scmp.ne.s32.totalorder %s436, %s438
      %p442 = scmp.eq.s32.totalorder %s46, 0
      %p443 = por %p441, %p442
      %p444 = scmp.ne.s32.totalorder %s436, %s438
      %p445 = scmp.eq.s32.totalorder %s51, 1
      %p446 = por %p444, %p445
      %p447 = scmp.ne.s32.totalorder %s438, %s439
      %p448 = scmp.eq.s32.totalorder %s51, 0
      %p449 = por %p447, %p448
      %p450 = scmp.ne.s32.totalorder %s438, %s439
      %p451 = scmp.eq.s32.totalorder %s52, 1
      %p452 = por %p450, %p451
      %p454 = scmp.ne.s32.totalorder %s439, %s453
      %p455 = scmp.eq.s32.totalorder %s52, 0
      %p456 = por %p454, %p455
      %s458 = sadd.s32 %s457, 1
      %p461 = scmp.eq.s32.totalorder %s46, 1
      %p462 = scmp.ne.s32.totalorder %s457, %s459
      %p463 = scmp.eq.s32.totalorder %s46, 0
      %p464 = por %p462, %p463
      %p465 = scmp.ne.s32.totalorder %s457, %s459
      %p466 = scmp.eq.s32.totalorder %s51, 1
      %p467 = por %p465, %p466
      %p468 = scmp.ne.s32.totalorder %s459, %s460
      %p469 = scmp.eq.s32.totalorder %s51, 0
      %p470 = por %p468, %p469
      %p471 = scmp.ne.s32.totalorder %s459, %s460
      %p472 = scmp.eq.s32.totalorder %s52, 1
      %p473 = por %p471, %p472
      %p475 = scmp.ne.s32.totalorder %s460, %s474
      %p476 = scmp.eq.s32.totalorder %s52, 0
      %p477 = por %p475, %p476
      %s479 = sadd.s32 %s478, 1
      %p482 = scmp.eq.s32.totalorder %s46, 1
      %p483 = scmp.ne.s32.totalorder %s478, %s480
      %p484 = scmp.eq.s32.totalorder %s46, 0
      %p485 = por %p483, %p484
      %p486 = scmp.ne.s32.totalorder %s478, %s480
      %p487 = scmp.eq.s32.totalorder %s51, 1
      %p488 = por %p486, %p487
      %p489 = scmp.ne.s32.totalorder %s480, %s481
      %p490 = scmp.eq.s32.totalorder %s51, 0
      %p491 = por %p489, %p490
      %p492 = scmp.ne.s32.totalorder %s480, %s481
      %p493 = scmp.eq.s32.totalorder %s52, 1
      %p494 = por %p492, %p493
      %p496 = scmp.ne.s32.totalorder %s481, %s495
      %p497 = scmp.eq.s32.totalorder %s52, 0
      %p498 = por %p496, %p497
      %s500 = sadd.s32 %s499, 1
      %p503 = scmp.eq.s32.totalorder %s46, 1
      %p504 = scmp.ne.s32.totalorder %s499, %s501
      %p505 = scmp.eq.s32.totalorder %s46, 0
      %p506 = por %p504, %p505
      %p507 = scmp.ne.s32.totalorder %s499, %s501
      %p508 = scmp.eq.s32.totalorder %s51, 1
      %p509 = por %p507, %p508
      %p510 = scmp.ne.s32.totalorder %s501, %s502
      %p511 = scmp.eq.s32.totalorder %s51, 0
      %p512 = por %p510, %p511
      %p513 = scmp.ne.s32.totalorder %s501, %s502
      %p514 = scmp.eq.s32.totalorder %s52, 1
      %p515 = por %p513, %p514
      %p517 = scmp.ne.s32.totalorder %s502, %s516
      %p518 = scmp.eq.s32.totalorder %s52, 0
      %p519 = por %p517, %p518
      %s520 = ssub.s32 %s53, %s65
      %p521 = scmp.eq.s32.totalorder %s520, 0
      %s523 = sadd.s32 %s522, 1
      %s524 = scalar_select %p521, %s522, %s523
      %p527 = pneg %p521
      %p528 = scmp.eq.s32.totalorder %s46, 1
      %p529 = por %p527, %p528
      %p530 = scmp.ne.s32.totalorder %s522, %s525
      %p531 = scmp.eq.s32.totalorder %s46, 0
      %p532 = por %p530, %p531
      %p533 = scmp.ne.s32.totalorder %s522, %s525
      %p534 = scmp.eq.s32.totalorder %s51, 1
      %p535 = por %p533, %p534
      %p536 = scmp.ne.s32.totalorder %s525, %s526
      %p537 = scmp.eq.s32.totalorder %s51, 0
      %p538 = por %p536, %p537
      %p539 = scmp.ne.s32.totalorder %s525, %s526
      %p540 = scmp.eq.s32.totalorder %s52, 1
      %p541 = por %p539, %p540
      %p543 = scmp.ne.s32.totalorder %s526, %s542
      %p544 = scmp.eq.s32.totalorder %s52, 0
      %p545 = por %p543, %p544
      %p546 = scmp.le.s32.totalorder 1, %s46
      %p547 = scmp.lt.s32.totalorder %s46, 3
      %p548 = pnand %p546, %p547
      %p549 = pneg %p548
      // Predicated region
      $region9: #{tpu_custom_call.1} parent=5 // pred_check
        _
      $region10: #{tpu_custom_call.1} parent=5 // pred_check_branch
        %551 = sbr.rel (%p548) target = $region12
      $region11: #{tpu_custom_call.1} parent=5 // pred_region
        %s552 = ssub.s32 %s46, 1
        // Predicated region
        $region13: #{tpu_custom_call.1} parent=11 // pred_check
          %p553 = pneg %p84
        $region14: #{tpu_custom_call.1} parent=11 // pred_check_branch
          %555 = sbr.rel (%p553) target = $region16
        $region15: #{tpu_custom_call.1} parent=11 // pred_region
          %s556 = smul.u32 2, %s55
          %s558 = ssub.s32 256, 256
          %559 = vsyncadd [#allocation4], %s558
          %s560 = smul.addr %s556, 2
          %s561 = smul.addr %s560, 64
          %s562 = scalar_lea.hbm %s0, %s561
          %s563 = sshll.u32 [#allocation3], 4
          %s564 = int_to_ptr.vmem [resolvable:$true] %s563
          %569 = dma.hbm_to_vmem [thread:$0]  %s562, 256, %s564, [#allocation4], 64, 64, 4
        $region16: #{tpu_custom_call.1} parent=11 // pred_fallthru
          _
        // Predicated region
        $region17: #{tpu_custom_call.1} parent=11 // pred_check
          %p570 = pneg %p105
        $region18: #{tpu_custom_call.1} parent=11 // pred_check_branch
          %572 = sbr.rel (%p570) target = $region20
        $region19: #{tpu_custom_call.1} parent=11 // pred_region
          %s574 = ssub.s32 384, 384
          %575 = vsyncadd [#allocation7], %s574
          %s576 = sshll.u32 [#allocation6], 4
          %s577 = int_to_ptr.vmem [resolvable:$true] %s576
          %582 = dma.hbm_to_vmem [thread:$0]  %s1, 384, %s577, [#allocation7], 64, 64, 4
        $region20: #{tpu_custom_call.1} parent=11 // pred_fallthru
          _
        // Predicated region
        $region21: #{tpu_custom_call.1} parent=11 // pred_check
          %p583 = pneg %p126
        $region22: #{tpu_custom_call.1} parent=11 // pred_check_branch
          %585 = sbr.rel (%p583) target = $region24
        $region23: #{tpu_custom_call.1} parent=11 // pred_region
          %s587 = ssub.s32 256, 256
          %588 = vsyncadd [#allocation7], %s587
          %s589 = sshll.u32 [#allocation8], 4
          %s590 = int_to_ptr.vmem [resolvable:$true] %s589
          %595 = dma.hbm_to_vmem [thread:$0]  %s2, 256, %s590, [#allocation7], 128, 128, 8
        $region24: #{tpu_custom_call.1} parent=11 // pred_fallthru
          _
        // Predicated region
        $region25: #{tpu_custom_call.1} parent=11 // pred_check
          %p596 = pneg %p199
        $region26: #{tpu_custom_call.1} parent=11 // pred_check_branch
          %598 = sbr.rel (%p596) target = $region28
        $region27: #{tpu_custom_call.1} parent=11 // pred_region
          %s600 = ssub.s32 256, 256
          %601 = vsyncadd [#allocation13], %s600
          %s602 = sshll.u32 [#allocation12], 4
          %s603 = int_to_ptr.vmem [resolvable:$true] %s602
          %608 = dma.hbm_to_vmem [thread:$0]  %s5, 256, %s603, [#allocation13], 64, 64, 4
        $region28: #{tpu_custom_call.1} parent=11 // pred_fallthru
          _
        // Predicated region
        $region29: #{tpu_custom_call.1} parent=11 // pred_check
          %p609 = pneg %p220
        $region30: #{tpu_custom_call.1} parent=11 // pred_check_branch
          %611 = sbr.rel (%p609) target = $region32
        $region31: #{tpu_custom_call.1} parent=11 // pred_region
          %s613 = ssub.s32 128, 128
          %614 = vsyncadd [#allocation13], %s613
          %s615 = sshll.u32 [#allocation14], 4
          %s616 = int_to_ptr.vmem [resolvable:$true] %s615
          %621 = dma.hbm_to_vmem [thread:$0]  %s6, 128, %s616, [#allocation13], 64, 64, 4
        $region32: #{tpu_custom_call.1} parent=11 // pred_fallthru
          _
        // Predicated region
        $region33: #{tpu_custom_call.1} parent=11 // pred_check
          %p622 = pneg %p449
        $region34: #{tpu_custom_call.1} parent=11 // pred_check_branch
          %624 = sbr.rel (%p622) target = $region36
        $region35: #{tpu_custom_call.1} parent=11 // pred_region
          %s626 = ssub.s32 16, 16
          %627 = vsyncadd [#allocation28], %s626
          %s629 = sshll.u32 [#allocation27], 4
          %s630 = int_to_ptr.vmem [resolvable:$true] %s629
          %632 = dma.hbm_to_vmem [thread:$0]  %s15, 16, %s630, [#allocation28]
        $region36: #{tpu_custom_call.1} parent=11 // pred_fallthru
          _
        // Predicated region
        $region37: #{tpu_custom_call.1} parent=11 // pred_check
          %p633 = pneg %p470
        $region38: #{tpu_custom_call.1} parent=11 // pred_check_branch
          %635 = sbr.rel (%p633) target = $region40
        $region39: #{tpu_custom_call.1} parent=11 // pred_region
          %s637 = ssub.s32 16, 16
          %638 = vsyncadd [#allocation28], %s637
          %s640 = sshll.u32 [#allocation29], 4
          %s641 = int_to_ptr.vmem [resolvable:$true] %s640
          %643 = dma.hbm_to_vmem [thread:$0]  %s16, 16, %s641, [#allocation28]
        $region40: #{tpu_custom_call.1} parent=11 // pred_fallthru
          _
        // Predicated region
        $region41: #{tpu_custom_call.1} parent=11 // pred_check
          %p644 = pneg %p491
        $region42: #{tpu_custom_call.1} parent=11 // pred_check_branch
          %646 = sbr.rel (%p644) target = $region44
        $region43: #{tpu_custom_call.1} parent=11 // pred_region
          %s648 = ssub.s32 512, 512
          %649 = vsyncadd [#allocation31], %s648
          %s650 = sshll.u32 [#allocation30], 4
          %s651 = int_to_ptr.vmem [resolvable:$true] %s650
          %656 = dma.hbm_to_vmem [thread:$0]  %s17, 512, %s651, [#allocation31], 128, 128, 8
        $region44: #{tpu_custom_call.1} parent=11 // pred_fallthru
          _
        // Predicated region
        $region45: #{tpu_custom_call.1} parent=11 // pred_check
          %p657 = pneg %p512
        $region46: #{tpu_custom_call.1} parent=11 // pred_check_branch
          %659 = sbr.rel (%p657) target = $region48
        $region47: #{tpu_custom_call.1} parent=11 // pred_region
          %s661 = ssub.s32 16, 16
          %662 = vsyncadd [#allocation31], %s661
          %s664 = sshll.u32 [#allocation32], 4
          %s665 = int_to_ptr.vmem [resolvable:$true] %s664
          %667 = dma.hbm_to_vmem [thread:$0]  %s18, 16, %s665, [#allocation31]
        $region48: #{tpu_custom_call.1} parent=11 // pred_fallthru
          _
      $region12: #{tpu_custom_call.1} parent=5 // pred_fallthru
        _
      %p668 = scmp.lt.s32.totalorder %s46, 2
      // Predicated region
      $region49: #{tpu_custom_call.1} parent=5 // pred_check
        %p669 = pneg %p668
      $region50: #{tpu_custom_call.1} parent=5 // pred_check_branch
        %671 = sbr.rel (%p669) target = $region52
      $region51: #{tpu_custom_call.1} parent=5 // pred_region
        // Predicated region
        $region53: #{tpu_custom_call.1} parent=51 // pred_check
          %p672 = pneg %p146
        $region54: #{tpu_custom_call.1} parent=51 // pred_check_branch
          %674 = sbr.rel (%p672) target = $region56
        $region55: #{tpu_custom_call.1} parent=51 // pred_region
          %s675 = sand.u32 %s46, 1
          %s676 = scalar_lea.sflag [#allocation10], %s675
          %s677 = sand.u32 %s136, 1
          %s678 = scalar_lea.vmem [#allocation9], %s677
          %s680 = ssub.s32 16, 16
          %681 = vsyncadd %s676, %s680
          %s682 = smul.addr %s54, 16
          %s683 = scalar_lea.hbm %s3, %s682
          %s685 = sshll.u32 %s678, 4
          %s686 = int_to_ptr.vmem [resolvable:$true] %s685
          %688 = dma.hbm_to_vmem [thread:$0]  %s683, 16, %s686, %s676
        $region56: #{tpu_custom_call.1} parent=51 // pred_fallthru
          _
        // Predicated region
        $region57: #{tpu_custom_call.1} parent=51 // pred_check
          %p689 = pneg %p172
        $region58: #{tpu_custom_call.1} parent=51 // pred_check_branch
          %691 = sbr.rel (%p689) target = $region60
        $region59: #{tpu_custom_call.1} parent=51 // pred_region
          %s692 = sand.u32 %s46, 1
          %s693 = scalar_lea.sflag [#allocation10], %s692
          %s694 = sand.u32 %s162, 1
          %s695 = scalar_lea.vmem [#allocation11], %s694
          %s697 = ssub.s32 16, 16
          %698 = vsyncadd %s693, %s697
          %s699 = smul.addr %s54, 16
          %s700 = scalar_lea.hbm %s4, %s699
          %s702 = sshll.u32 %s695, 4
          %s703 = int_to_ptr.vmem [resolvable:$true] %s702
          %705 = dma.hbm_to_vmem [thread:$0]  %s700, 16, %s703, %s693
        $region60: #{tpu_custom_call.1} parent=51 // pred_fallthru
          _
        // Predicated region
        $region61: #{tpu_custom_call.1} parent=51 // pred_check
          %p706 = pneg %p240
        $region62: #{tpu_custom_call.1} parent=51 // pred_check_branch
          %708 = sbr.rel (%p706) target = $region64
        $region63: #{tpu_custom_call.1} parent=51 // pred_region
          %s709 = sand.u32 %s46, 1
          %s710 = scalar_lea.sflag [#allocation16], %s709
          %s711 = sand.u32 %s230, 1
          %s712 = smul.addr %s711, 16
          %s713 = scalar_lea.vmem [#allocation15], %s712
          %s715 = ssub.s32 256, 256
          %716 = vsyncadd %s710, %s715
          %s717 = smul.addr %s54, 2
          %s718 = smul.addr %s717, 128
          %s719 = scalar_lea.hbm %s7, %s718
          %s720 = sshll.u32 %s713, 4
          %s721 = int_to_ptr.vmem [resolvable:$true] %s720
          %726 = dma.hbm_to_vmem [thread:$0]  %s719, 256, %s721, %s710, 128, 128, 8
        $region64: #{tpu_custom_call.1} parent=51 // pred_fallthru
          _
        // Predicated region
        $region65: #{tpu_custom_call.1} parent=51 // pred_check
          %p727 = pneg %p266
        $region66: #{tpu_custom_call.1} parent=51 // pred_check_branch
          %729 = sbr.rel (%p727) target = $region68
        $region67: #{tpu_custom_call.1} parent=51 // pred_region
          %s730 = sand.u32 %s46, 1
          %s731 = scalar_lea.sflag [#allocation16], %s730
          %s732 = sand.u32 %s256, 1
          %s733 = smul.addr %s732, 16
          %s734 = scalar_lea.vmem [#allocation17], %s733
          %s736 = ssub.s32 256, 256
          %737 = vsyncadd %s731, %s736
          %s738 = smul.addr %s54, 2
          %s739 = smul.addr %s738, 128
          %s740 = scalar_lea.hbm %s8, %s739
          %s741 = sshll.u32 %s734, 4
          %s742 = int_to_ptr.vmem [resolvable:$true] %s741
          %747 = dma.hbm_to_vmem [thread:$0]  %s740, 256, %s742, %s731, 128, 128, 8
        $region68: #{tpu_custom_call.1} parent=51 // pred_fallthru
          _
        // Predicated region
        $region69: #{tpu_custom_call.1} parent=51 // pred_check
          %p748 = pneg %p292
        $region70: #{tpu_custom_call.1} parent=51 // pred_check_branch
          %750 = sbr.rel (%p748) target = $region72
        $region71: #{tpu_custom_call.1} parent=51 // pred_region
          %s751 = sand.u32 %s46, 1
          %s752 = scalar_lea.sflag [#allocation19], %s751
          %s753 = sand.u32 %s282, 1
          %s754 = scalar_lea.vmem [#allocation18], %s753
          %s756 = ssub.s32 16, 16
          %757 = vsyncadd %s752, %s756
          %s758 = smul.addr %s54, 16
          %s759 = scalar_lea.hbm %s9, %s758
          %s761 = sshll.u32 %s754, 4
          %s762 = int_to_ptr.vmem [resolvable:$true] %s761
          %764 = dma.hbm_to_vmem [thread:$0]  %s759, 16, %s762, %s752
        $region72: #{tpu_custom_call.1} parent=51 // pred_fallthru
          _
        // Predicated region
        $region73: #{tpu_custom_call.1} parent=51 // pred_check
          %p765 = pneg %p318
        $region74: #{tpu_custom_call.1} parent=51 // pred_check_branch
          %767 = sbr.rel (%p765) target = $region76
        $region75: #{tpu_custom_call.1} parent=51 // pred_region
          %s768 = sand.u32 %s46, 1
          %s769 = scalar_lea.sflag [#allocation19], %s768
          %s770 = sand.u32 %s308, 1
          %s771 = scalar_lea.vmem [#allocation20], %s770
          %s773 = ssub.s32 16, 16
          %774 = vsyncadd %s769, %s773
          %s775 = smul.addr %s54, 16
          %s776 = scalar_lea.hbm %s10, %s775
          %s778 = sshll.u32 %s771, 4
          %s779 = int_to_ptr.vmem [resolvable:$true] %s778
          %781 = dma.hbm_to_vmem [thread:$0]  %s776, 16, %s779, %s769
        $region76: #{tpu_custom_call.1} parent=51 // pred_fallthru
          _
        // Predicated region
        $region77: #{tpu_custom_call.1} parent=51 // pred_check
          %p782 = pneg %p344
        $region78: #{tpu_custom_call.1} parent=51 // pred_check_branch
          %784 = sbr.rel (%p782) target = $region80
        $region79: #{tpu_custom_call.1} parent=51 // pred_region
          %s785 = sand.u32 %s46, 1
          %s786 = scalar_lea.sflag [#allocation22], %s785
          %s787 = sand.u32 %s334, 1
          %s788 = smul.addr %s787, 16
          %s789 = scalar_lea.vmem [#allocation21], %s788
          %s791 = ssub.s32 256, 256
          %792 = vsyncadd %s786, %s791
          %s793 = smul.addr %s54, 4
          %s794 = smul.addr %s793, 64
          %s795 = scalar_lea.hbm %s11, %s794
          %s796 = sshll.u32 %s789, 4
          %s797 = int_to_ptr.vmem [resolvable:$true] %s796
          %802 = dma.hbm_to_vmem [thread:$0]  %s795, 256, %s797, %s786, 64, 64, 4
        $region80: #{tpu_custom_call.1} parent=51 // pred_fallthru
          _
        // Predicated region
        $region81: #{tpu_custom_call.1} parent=51 // pred_check
          %p803 = pneg %p370
        $region82: #{tpu_custom_call.1} parent=51 // pred_check_branch
          %805 = sbr.rel (%p803) target = $region84
        $region83: #{tpu_custom_call.1} parent=51 // pred_region
          %s806 = sand.u32 %s46, 1
          %s807 = scalar_lea.sflag [#allocation22], %s806
          %s808 = sand.u32 %s360, 1
          %s809 = scalar_lea.vmem [#allocation23], %s808
          %s811 = ssub.s32 16, 16
          %812 = vsyncadd %s807, %s811
          %s813 = smul.addr %s54, 16
          %s814 = scalar_lea.hbm %s12, %s813
          %s816 = sshll.u32 %s809, 4
          %s817 = int_to_ptr.vmem [resolvable:$true] %s816
          %819 = dma.hbm_to_vmem [thread:$0]  %s814, 16, %s817, %s807
        $region84: #{tpu_custom_call.1} parent=51 // pred_fallthru
          _
        // Predicated region
        $region85: #{tpu_custom_call.1} parent=51 // pred_check
          %p820 = pneg %p396
        $region86: #{tpu_custom_call.1} parent=51 // pred_check_branch
          %822 = sbr.rel (%p820) target = $region88
        $region87: #{tpu_custom_call.1} parent=51 // pred_region
          %s823 = sand.u32 %s46, 1
          %s824 = scalar_lea.sflag [#allocation25], %s823
          %s825 = sand.u32 %s386, 1
          %s826 = smul.addr %s825, 64
          %s827 = scalar_lea.vmem [#allocation24], %s826
          %s829 = ssub.s32 1024, 1024
          %830 = vsyncadd %s824, %s829
          %s831 = smul.addr %s54, 16
          %s832 = smul.addr %s831, 64
          %s833 = scalar_lea.hbm %s13, %s832
          %s834 = sshll.u32 %s827, 4
          %s835 = int_to_ptr.vmem [resolvable:$true] %s834
          %840 = dma.hbm_to_vmem [thread:$0]  %s833, 1024, %s835, %s824, 64, 64, 4
        $region88: #{tpu_custom_call.1} parent=51 // pred_fallthru
          _
        // Predicated region
        $region89: #{tpu_custom_call.1} parent=51 // pred_check
          %p841 = pneg %p422
        $region90: #{tpu_custom_call.1} parent=51 // pred_check_branch
          %843 = sbr.rel (%p841) target = $region92
        $region91: #{tpu_custom_call.1} parent=51 // pred_region
          %s844 = sand.u32 %s46, 1
          %s845 = scalar_lea.sflag [#allocation25], %s844
          %s846 = sand.u32 %s412, 1
          %s847 = scalar_lea.vmem [#allocation26], %s846
          %s849 = ssub.s32 16, 16
          %850 = vsyncadd %s845, %s849
          %s851 = smul.addr %s54, 16
          %s852 = scalar_lea.hbm %s14, %s851
          %s854 = sshll.u32 %s847, 4
          %s855 = int_to_ptr.vmem [resolvable:$true] %s854
          %857 = dma.hbm_to_vmem [thread:$0]  %s852, 16, %s855, %s845
        $region92: #{tpu_custom_call.1} parent=51 // pred_fallthru
          _
      $region52: #{tpu_custom_call.1} parent=5 // pred_fallthru
        _
      %p858 = scmp.le.s32.totalorder 1, %s46
      %p859 = scmp.lt.s32.totalorder %s46, 3
      %p860 = pnand %p858, %p859
      %p861 = pneg %p860
      // Predicated region
      $region93: #{tpu_custom_call.1} parent=5 // pred_check
        _
      $region94: #{tpu_custom_call.1} parent=5 // pred_check_branch
        %863 = sbr.rel (%p860) target = $region96
      $region95: #{tpu_custom_call.1} parent=5 // pred_region
        %s864 = ssub.s32 %s46, 1
        // Predicated region
        $region97: #{tpu_custom_call.1} parent=95 // pred_check
          %p865 = pneg %p84
        $region98: #{tpu_custom_call.1} parent=95 // pred_check_branch
          %867 = sbr.rel (%p865) target = $region100
        $region99: #{tpu_custom_call.1} parent=95 // pred_region
          %868 = dma.done [#allocation4], 256
        $region100: #{tpu_custom_call.1} parent=95 // pred_fallthru
          _
        // Predicated region
        $region101: #{tpu_custom_call.1} parent=95 // pred_check
          %p869 = pneg %p105
        $region102: #{tpu_custom_call.1} parent=95 // pred_check_branch
          %871 = sbr.rel (%p869) target = $region104
        $region103: #{tpu_custom_call.1} parent=95 // pred_region
          %872 = dma.done [#allocation7], 384
        $region104: #{tpu_custom_call.1} parent=95 // pred_fallthru
          _
        // Predicated region
        $region105: #{tpu_custom_call.1} parent=95 // pred_check
          %p873 = pneg %p126
        $region106: #{tpu_custom_call.1} parent=95 // pred_check_branch
          %875 = sbr.rel (%p873) target = $region108
        $region107: #{tpu_custom_call.1} parent=95 // pred_region
          %876 = dma.done [#allocation7], 256
        $region108: #{tpu_custom_call.1} parent=95 // pred_fallthru
          _
        %s877 = sand.u32 %s51, 1
        %s878 = scalar_lea.sflag [#allocation10], %s877
        %s879 = sand.u32 %s139, 1
        %s880 = scalar_lea.vmem [#allocation9], %s879
        // Predicated region
        $region109: #{tpu_custom_call.1} parent=95 // pred_check
          %p881 = pneg %p152
        $region110: #{tpu_custom_call.1} parent=95 // pred_check_branch
          %883 = sbr.rel (%p881) target = $region112
        $region111: #{tpu_custom_call.1} parent=95 // pred_region
          %884 = dma.done %s878, 16
        $region112: #{tpu_custom_call.1} parent=95 // pred_fallthru
          _
        %s885 = sand.u32 %s51, 1
        %s886 = scalar_lea.sflag [#allocation10], %s885
        %s887 = sand.u32 %s165, 1
        %s888 = scalar_lea.vmem [#allocation11], %s887
        // Predicated region
        $region113: #{tpu_custom_call.1} parent=95 // pred_check
          %p889 = pneg %p178
        $region114: #{tpu_custom_call.1} parent=95 // pred_check_branch
          %891 = sbr.rel (%p889) target = $region116
        $region115: #{tpu_custom_call.1} parent=95 // pred_region
          %892 = dma.done %s886, 16
        $region116: #{tpu_custom_call.1} parent=95 // pred_fallthru
          _
        // Predicated region
        $region117: #{tpu_custom_call.1} parent=95 // pred_check
          %p893 = pneg %p199
        $region118: #{tpu_custom_call.1} parent=95 // pred_check_branch
          %895 = sbr.rel (%p893) target = $region120
        $region119: #{tpu_custom_call.1} parent=95 // pred_region
          %896 = dma.done [#allocation13], 256
        $region120: #{tpu_custom_call.1} parent=95 // pred_fallthru
          _
        // Predicated region
        $region121: #{tpu_custom_call.1} parent=95 // pred_check
          %p897 = pneg %p220
        $region122: #{tpu_custom_call.1} parent=95 // pred_check_branch
          %899 = sbr.rel (%p897) target = $region124
        $region123: #{tpu_custom_call.1} parent=95 // pred_region
          %900 = dma.done [#allocation13], 128
        $region124: #{tpu_custom_call.1} parent=95 // pred_fallthru
          _
        %s901 = sand.u32 %s51, 1
        %s902 = scalar_lea.sflag [#allocation16], %s901
        %s903 = sand.u32 %s233, 1
        %s904 = smul.addr %s903, 16
        %s905 = scalar_lea.vmem [#allocation15], %s904
        // Predicated region
        $region125: #{tpu_custom_call.1} parent=95 // pred_check
          %p906 = pneg %p246
        $region126: #{tpu_custom_call.1} parent=95 // pred_check_branch
          %908 = sbr.rel (%p906) target = $region128
        $region127: #{tpu_custom_call.1} parent=95 // pred_region
          %909 = dma.done %s902, 256
        $region128: #{tpu_custom_call.1} parent=95 // pred_fallthru
          _
        %s910 = sand.u32 %s51, 1
        %s911 = scalar_lea.sflag [#allocation16], %s910
        %s912 = sand.u32 %s259, 1
        %s913 = smul.addr %s912, 16
        %s914 = scalar_lea.vmem [#allocation17], %s913
        // Predicated region
        $region129: #{tpu_custom_call.1} parent=95 // pred_check
          %p915 = pneg %p272
        $region130: #{tpu_custom_call.1} parent=95 // pred_check_branch
          %917 = sbr.rel (%p915) target = $region132
        $region131: #{tpu_custom_call.1} parent=95 // pred_region
          %918 = dma.done %s911, 256
        $region132: #{tpu_custom_call.1} parent=95 // pred_fallthru
          _
        %s919 = sand.u32 %s51, 1
        %s920 = scalar_lea.sflag [#allocation19], %s919
        %s921 = sand.u32 %s285, 1
        %s922 = scalar_lea.vmem [#allocation18], %s921
        // Predicated region
        $region133: #{tpu_custom_call.1} parent=95 // pred_check
          %p923 = pneg %p298
        $region134: #{tpu_custom_call.1} parent=95 // pred_check_branch
          %925 = sbr.rel (%p923) target = $region136
        $region135: #{tpu_custom_call.1} parent=95 // pred_region
          %926 = dma.done %s920, 16
        $region136: #{tpu_custom_call.1} parent=95 // pred_fallthru
          _
        %s927 = sand.u32 %s51, 1
        %s928 = scalar_lea.sflag [#allocation19], %s927
        %s929 = sand.u32 %s311, 1
        %s930 = scalar_lea.vmem [#allocation20], %s929
        // Predicated region
        $region137: #{tpu_custom_call.1} parent=95 // pred_check
          %p931 = pneg %p324
        $region138: #{tpu_custom_call.1} parent=95 // pred_check_branch
          %933 = sbr.rel (%p931) target = $region140
        $region139: #{tpu_custom_call.1} parent=95 // pred_region
          %934 = dma.done %s928, 16
        $region140: #{tpu_custom_call.1} parent=95 // pred_fallthru
          _
        %s935 = sand.u32 %s51, 1
        %s936 = scalar_lea.sflag [#allocation22], %s935
        %s937 = sand.u32 %s337, 1
        %s938 = smul.addr %s937, 16
        %s939 = scalar_lea.vmem [#allocation21], %s938
        // Predicated region
        $region141: #{tpu_custom_call.1} parent=95 // pred_check
          %p940 = pneg %p350
        $region142: #{tpu_custom_call.1} parent=95 // pred_check_branch
          %942 = sbr.rel (%p940) target = $region144
        $region143: #{tpu_custom_call.1} parent=95 // pred_region
          %943 = dma.done %s936, 256
        $region144: #{tpu_custom_call.1} parent=95 // pred_fallthru
          _
        %s944 = sand.u32 %s51, 1
        %s945 = scalar_lea.sflag [#allocation22], %s944
        %s946 = sand.u32 %s363, 1
        %s947 = scalar_lea.vmem [#allocation23], %s946
        // Predicated region
        $region145: #{tpu_custom_call.1} parent=95 // pred_check
          %p948 = pneg %p376
        $region146: #{tpu_custom_call.1} parent=95 // pred_check_branch
          %950 = sbr.rel (%p948) target = $region148
        $region147: #{tpu_custom_call.1} parent=95 // pred_region
          %951 = dma.done %s945, 16
        $region148: #{tpu_custom_call.1} parent=95 // pred_fallthru
          _
        %s952 = sand.u32 %s51, 1
        %s953 = scalar_lea.sflag [#allocation25], %s952
        %s954 = sand.u32 %s389, 1
        %s955 = smul.addr %s954, 64
        %s956 = scalar_lea.vmem [#allocation24], %s955
        // Predicated region
        $region149: #{tpu_custom_call.1} parent=95 // pred_check
          %p957 = pneg %p402
        $region150: #{tpu_custom_call.1} parent=95 // pred_check_branch
          %959 = sbr.rel (%p957) target = $region152
        $region151: #{tpu_custom_call.1} parent=95 // pred_region
          %960 = dma.done %s953, 1024
        $region152: #{tpu_custom_call.1} parent=95 // pred_fallthru
          _
        %s961 = sand.u32 %s51, 1
        %s962 = scalar_lea.sflag [#allocation25], %s961
        %s963 = sand.u32 %s415, 1
        %s964 = scalar_lea.vmem [#allocation26], %s963
        // Predicated region
        $region153: #{tpu_custom_call.1} parent=95 // pred_check
          %p965 = pneg %p428
        $region154: #{tpu_custom_call.1} parent=95 // pred_check_branch
          %967 = sbr.rel (%p965) target = $region156
        $region155: #{tpu_custom_call.1} parent=95 // pred_region
          %968 = dma.done %s962, 16
        $region156: #{tpu_custom_call.1} parent=95 // pred_fallthru
          _
        // Predicated region
        $region157: #{tpu_custom_call.1} parent=95 // pred_check
          %p969 = pneg %p449
        $region158: #{tpu_custom_call.1} parent=95 // pred_check_branch
          %971 = sbr.rel (%p969) target = $region160
        $region159: #{tpu_custom_call.1} parent=95 // pred_region
          %972 = dma.done [#allocation28], 16
        $region160: #{tpu_custom_call.1} parent=95 // pred_fallthru
          _
        // Predicated region
        $region161: #{tpu_custom_call.1} parent=95 // pred_check
          %p973 = pneg %p470
        $region162: #{tpu_custom_call.1} parent=95 // pred_check_branch
          %975 = sbr.rel (%p973) target = $region164
        $region163: #{tpu_custom_call.1} parent=95 // pred_region
          %976 = dma.done [#allocation28], 16
        $region164: #{tpu_custom_call.1} parent=95 // pred_fallthru
          _
        // Predicated region
        $region165: #{tpu_custom_call.1} parent=95 // pred_check
          %p977 = pneg %p491
        $region166: #{tpu_custom_call.1} parent=95 // pred_check_branch
          %979 = sbr.rel (%p977) target = $region168
        $region167: #{tpu_custom_call.1} parent=95 // pred_region
          %980 = dma.done [#allocation31], 512
        $region168: #{tpu_custom_call.1} parent=95 // pred_fallthru
          _
        // Predicated region
        $region169: #{tpu_custom_call.1} parent=95 // pred_check
          %p981 = pneg %p512
        $region170: #{tpu_custom_call.1} parent=95 // pred_check_branch
          %983 = sbr.rel (%p981) target = $region172
        $region171: #{tpu_custom_call.1} parent=95 // pred_region
          %984 = dma.done [#allocation31], 16
        $region172: #{tpu_custom_call.1} parent=95 // pred_fallthru
          _
        %p985 = pneg %p84
        %p986 = pneg %p81
        %p987 = pneg %p105
        %p988 = pneg %p102
        %p989 = pneg %p126
        %p990 = pneg %p123
        %s991 = sand.u32 %s51, 1
        %s992 = scalar_lea.sflag [#allocation10], %s991
        %s993 = sand.u32 %s139, 1
        %s994 = scalar_lea.vmem [#allocation9], %s993
        %p995 = pneg %p152
        %p996 = pneg %p149
        %s997 = sand.u32 %s51, 1
        %s998 = scalar_lea.sflag [#allocation10], %s997
        %s999 = sand.u32 %s165, 1
        %s1000 = scalar_lea.vmem [#allocation11], %s999
        %p1001 = pneg %p178
        %p1002 = pneg %p175
        %p1003 = pneg %p199
        %p1004 = pneg %p196
        %p1005 = pneg %p220
        %p1006 = pneg %p217
        %s1007 = sand.u32 %s51, 1
        %s1008 = scalar_lea.sflag [#allocation16], %s1007
        %s1009 = sand.u32 %s233, 1
        %s1010 = smul.addr %s1009, 16
        %s1011 = scalar_lea.vmem [#allocation15], %s1010
        %p1012 = pneg %p246
        %p1013 = pneg %p243
        %s1014 = sand.u32 %s51, 1
        %s1015 = scalar_lea.sflag [#allocation16], %s1014
        %s1016 = sand.u32 %s259, 1
        %s1017 = smul.addr %s1016, 16
        %s1018 = scalar_lea.vmem [#allocation17], %s1017
        %p1019 = pneg %p272
        %p1020 = pneg %p269
        %s1021 = sand.u32 %s51, 1
        %s1022 = scalar_lea.sflag [#allocation19], %s1021
        %s1023 = sand.u32 %s285, 1
        %s1024 = scalar_lea.vmem [#allocation18], %s1023
        %p1025 = pneg %p298
        %p1026 = pneg %p295
        %s1027 = sand.u32 %s51, 1
        %s1028 = scalar_lea.sflag [#allocation19], %s1027
        %s1029 = sand.u32 %s311, 1
        %s1030 = scalar_lea.vmem [#allocation20], %s1029
        %p1031 = pneg %p324
        %p1032 = pneg %p321
        %s1033 = sand.u32 %s51, 1
        %s1034 = scalar_lea.sflag [#allocation22], %s1033
        %s1035 = sand.u32 %s337, 1
        %s1036 = smul.addr %s1035, 16
        %s1037 = scalar_lea.vmem [#allocation21], %s1036
        %p1038 = pneg %p350
        %p1039 = pneg %p347
        %s1040 = sand.u32 %s51, 1
        %s1041 = scalar_lea.sflag [#allocation22], %s1040
        %s1042 = sand.u32 %s363, 1
        %s1043 = scalar_lea.vmem [#allocation23], %s1042
        %p1044 = pneg %p376
        %p1045 = pneg %p373
        %s1046 = sand.u32 %s51, 1
        %s1047 = scalar_lea.sflag [#allocation25], %s1046
        %s1048 = sand.u32 %s389, 1
        %s1049 = smul.addr %s1048, 64
        %s1050 = scalar_lea.vmem [#allocation24], %s1049
        %p1051 = pneg %p402
        %p1052 = pneg %p399
        %s1053 = sand.u32 %s51, 1
        %s1054 = scalar_lea.sflag [#allocation25], %s1053
        %s1055 = sand.u32 %s415, 1
        %s1056 = scalar_lea.vmem [#allocation26], %s1055
        %p1057 = pneg %p428
        %p1058 = pneg %p425
        %p1059 = pneg %p449
        %p1060 = pneg %p446
        %p1061 = pneg %p470
        %p1062 = pneg %p467
        %p1063 = pneg %p491
        %p1064 = pneg %p488
        %p1065 = pneg %p512
        %p1066 = pneg %p509
        %p1067 = pneg %p538
        %p1068 = pneg %p535
        %s1069 = smul.u32 2, %s55
        %p1071 = scmp.eq.s32.totalorder %s56, 0
        // Predicated region
        $region173: #{tpu_custom_call.1} parent=95 // pred_check
          %p1072 = pneg %p1071
        $region174: #{tpu_custom_call.1} parent=95 // pred_check_branch
          %1074 = sbr.rel (%p1072) target = $region176
        $region175: #{tpu_custom_call.1} parent=95 // pred_region
          %v1075 = vld [vmem:[#allocation3] sm:$0xf]
          %v1076 = vld [vmem:[#allocation3 + $0x4] sm:$0xf]
          %v1077 = vld [vmem:[#allocation3 + $0x8] sm:$0xf]
          %v1078 = vld [vmem:[#allocation3 + $0xc] sm:$0xf]
          %v1079 = vld [vmem:[#allocation6] sm:$0xf]
          %v1080 = vld [vmem:[#allocation6 + $0x4] sm:$0xf]
          %v1081 = vld [vmem:[#allocation6 + $0x8] sm:$0xf]
          %v1082 = vld [vmem:[#allocation6 + $0xc] sm:$0xf]
          %v1083 = vld [vmem:[#allocation6 + $0x10] sm:$0xf]
          %v1084 = vld [vmem:[#allocation6 + $0x14] sm:$0xf]
          %v1089 = vunpack.c.l.b16 %v1075
          %v1090 = vunpack.c.l.b16 %v1076
          %v1091 = vunpack.c.l.b16 %v1077
          %v1092 = vunpack.c.l.b16 %v1078
          %v1093 = vpack.c.b16 %v1090, %v1089
          %v1094 = vpack.c.b16 %v1092, %v1091
          %v1101 = vunpack.c.l.b16 %v1079
          %v1102 = vunpack.c.l.b16 %v1080
          %v1103 = vunpack.c.l.b16 %v1081
          %v1104 = vunpack.c.l.b16 %v1082
          %v1105 = vunpack.c.l.b16 %v1083
          %v1106 = vunpack.c.l.b16 %v1084
          %v1107 = vpack.c.b16 %v1102, %v1101
          %v1108 = vpack.c.b16 %v1104, %v1103
          %v1109 = vpack.c.b16 %v1106, %v1105
          %vm1113 = vcmask 392192
          %v1115 = vsel %vm1113, %v1093, 0
          %v1118 = vsel %vm1113, %v1094, 0
          %1120 = vmatprep.subr.bf16.mxu0 0
          %1121 = vmatpush1.bf16.msra.mxu0 %v1107
          %1122 = vmatprep.subr.bf16.mxu0 0
          %1123 = vmatpush1.bf16.msra.mxu0 %v1108
          %1124 = vmatprep.subr.bf16.mxu0 0
          %1125 = vmatpush1.bf16.msra.mxu0 %v1109
          %1126 = vmatprep.subr.bf16.mxu0 0
          %1127 = vmatpush1.bf16.msra.mxu0 0
          %1128 = vmatprep.subr.bf16.mxu0 0
          %1129 = vmatpush1.bf16.msra.mxu0 0
          %1130 = vmatprep.subr.bf16.mxu0 0
          %1131 = vmatpush1.bf16.msra.mxu0 0
          %1132 = vmatprep.subr.bf16.mxu0 0
          %1133 = vmatpush1.bf16.msra.mxu0 0
          %1134 = vmatprep.subr.bf16.mxu0 0
          %1135 = vmatpush1.bf16.msra.mxu0 0
          %1136 = vmatprep.subr.bf16.mxu0 0
          %1137 = vmatpush1.bf16.msra.mxu0 0
          %1138 = vmatprep.subr.bf16.mxu0 0
          %1139 = vmatpush1.bf16.msra.mxu0 0
          %1140 = vmatprep.subr.bf16.mxu0 0
          %1141 = vmatpush1.bf16.msra.mxu0 0
          %1142 = vmatprep.subr.bf16.mxu0 0
          %1143 = vmatpush1.bf16.msra.mxu0 0
          %1144 = vmatprep.subr.bf16.mxu0 0
          %1145 = vmatpush1.bf16.msra.mxu0 0
          %1146 = vmatprep.subr.bf16.mxu0 0
          %1147 = vmatpush1.bf16.msra.mxu0 0
          %1148 = vmatprep.subr.bf16.mxu0 0
          %1149 = vmatpush1.bf16.msra.mxu0 0
          %1150 = vmatprep.subr.bf16.mxu0 0
          %1151 = vmatpush1.bf16.msra.mxu0 0
          %1152 = vmatprep.mubr.bf16.mxu0 0
          %1153 = vmatmul.mubr.bf16.gmra.mrb[0].mxu0 %v1115
          %v1154 = vpop.f32.mrb[0].mxu0
          %v1155 = vadd.f32 0.0, %v1154
          %v1156 = vpop.f32.mrb[0].mxu0
          %v1157 = vpop.f32.mrb[0].mxu0
          %v1158 = vadd.f32 0.0, %v1157
          %v1159 = vpop.f32.mrb[0].mxu0
          %1160 = vmatprep.mubr.bf16.mxu0 0
          %1161 = vmatmul.mubr.bf16.gmra.mrb[0].mxu0 %v1118
          %v1162 = vpop.f32.mrb[0].mxu0
          %v1163 = vadd.f32 0.0, %v1162
          %v1164 = vpop.f32.mrb[0].mxu0
          %v1165 = vpop.f32.mrb[0].mxu0
          %v1166 = vadd.f32 0.0, %v1165
          %v1167 = vpop.f32.mrb[0].mxu0
          %1168 = vdwg.mxu0
          %v1169 = vld [vmem:[#allocation8] sm:$0xff]
          %v1170 = vld [vmem:[#allocation8 + $0x8] sm:$0xff]
          %v1171 = vadd.f32 %v1155, %v1169
          %v1172 = vadd.f32 %v1158, %v1170
          %v1173 = vadd.f32 %v1163, %v1169
          %v1174 = vadd.f32 %v1166, %v1170
          %vm1175 = vcmask 261120
          %1176 = vst.msk [vmem:[#allocation2] sm:$0xff] %vm1175, %v1171
          %1177 = vst.msk [vmem:[#allocation2 + $0x8] sm:$0xff] %vm1175, %v1172
          %1178 = vst.msk [vmem:[#allocation2 + $0x10] sm:$0xff] %vm1175, %v1173
          %1179 = vst.msk [vmem:[#allocation2 + $0x18] sm:$0xff] %vm1175, %v1174
        $region176: #{tpu_custom_call.1} parent=95 // pred_fallthru
          _
        %v1180 = vld [vmem:[#allocation2] sm:$0xff]
        %v1181 = vld [vmem:[#allocation2 + $0x8] sm:$0xff]
        %v1182 = vld [vmem:[#allocation2 + $0x10] sm:$0xff]
        %v1183 = vld [vmem:[#allocation2 + $0x18] sm:$0xff]
        %v1184 = vld [vmem:[%s880] sm:$0x1]
        %v1185 = vld [vmem:[%s888] sm:$0x1]
        %vm1186 = vcmask 261120
        %v1187 = vsel %vm1186, %v1180, 0.0
        %1188 = vadd.xlane.f32.xlu0 %v1187
        %v1189 = vpop.xlane.xlu0 %1188
        %v1190 = vsel %vm1186, %v1181, 0.0
        %1191 = vadd.xlane.f32.xlu0 %v1190
        %v1192 = vpop.xlane.xlu0 %1191
        %v1193 = vsel %vm1186, %v1182, 0.0
        %1194 = vadd.xlane.f32.xlu0 %v1193
        %v1195 = vpop.xlane.xlu0 %1194
        %v1196 = vsel %vm1186, %v1183, 0.0
        %1197 = vadd.xlane.f32.xlu0 %v1196
        %v1198 = vpop.xlane.xlu0 %1197
        %v1199 = vrcp.pop 32.0
        %v1200 = vmul.f32 %v1189, %v1199
        %v1201 = vmul.f32 %v1192, %v1199
        %v1202 = vmul.f32 %v1195, %v1199
        %v1203 = vmul.f32 %v1198, %v1199
        %v1204 = vsub.f32 %v1180, %v1200
        %v1205 = vsub.f32 %v1181, %v1201
        %v1206 = vsub.f32 %v1182, %v1202
        %v1207 = vsub.f32 %v1183, %v1203
        %v1208 = vmul.f32 %v1204, %v1204
        %v1209 = vmul.f32 %v1205, %v1205
        %v1210 = vmul.f32 %v1206, %v1206
        %v1211 = vmul.f32 %v1207, %v1207
        %v1212 = vsel %vm1186, %v1208, 0.0
        %1213 = vadd.xlane.f32.xlu0 %v1212
        %v1214 = vpop.xlane.xlu0 %1213
        %v1215 = vsel %vm1186, %v1209, 0.0
        %1216 = vadd.xlane.f32.xlu0 %v1215
        %v1217 = vpop.xlane.xlu0 %1216
        %v1218 = vsel %vm1186, %v1210, 0.0
        %1219 = vadd.xlane.f32.xlu0 %v1218
        %v1220 = vpop.xlane.xlu0 %1219
        %v1221 = vsel %vm1186, %v1211, 0.0
        %1222 = vadd.xlane.f32.xlu0 %v1221
        %v1223 = vpop.xlane.xlu0 %1222
        %v1224 = vmul.f32 %v1214, %v1199
        %v1225 = vmul.f32 %v1217, %v1199
        %v1226 = vmul.f32 %v1220, %v1199
        %v1227 = vmul.f32 %v1223, %v1199
        %v1228 = vadd.f32 %v1224, 1e-05
        %v1229 = vadd.f32 %v1225, 1e-05
        %v1230 = vadd.f32 %v1226, 1e-05
        %v1231 = vadd.f32 %v1227, 1e-05
        %v1232 = vrsqrt.pop %v1228
        %v1233 = vrsqrt.pop %v1229
        %v1234 = vrsqrt.pop %v1230
        %v1235 = vrsqrt.pop %v1231
        %v1236 = vmul.f32 %v1204, %v1232
        %v1237 = vmul.f32 %v1205, %v1233
        %v1238 = vmul.f32 %v1206, %v1234
        %v1239 = vmul.f32 %v1207, %v1235
        %v1241 = vlaneseq
        %v1242 = vshrl.u32 %v1241, 7
        %v1243 = vsub.s32 0, %v1242
        %v1244 = vrot.slane %v1184, %v1243
        %v1246 = vmul.f32 %v1236, %v1244
        %v1247 = vmul.f32 %v1237, %v1244
        %v1248 = vmul.f32 %v1238, %v1244
        %v1249 = vmul.f32 %v1239, %v1244
        %v1251 = vlaneseq
        %v1252 = vshrl.u32 %v1251, 7
        %v1253 = vsub.s32 0, %v1252
        %v1254 = vrot.slane %v1185, %v1253
        %v1256 = vadd.f32 %v1246, %v1254
        %v1257 = vadd.f32 %v1247, %v1254
        %v1258 = vadd.f32 %v1248, %v1254
        %v1259 = vadd.f32 %v1249, %v1254
        %v1260 = vpack.c.bf16 %v1257, %v1256
        %v1261 = vpack.c.bf16 %v1259, %v1258
        %v1262 = vld [vmem:[#allocation12] sm:$0xf]
        %v1263 = vld [vmem:[#allocation12 + $0x4] sm:$0xf]
        %v1264 = vld [vmem:[#allocation12 + $0x8] sm:$0xf]
        %v1265 = vld [vmem:[#allocation12 + $0xc] sm:$0xf]
        %v1266 = vld [vmem:[#allocation14] sm:$0xf]
        %v1267 = vld [vmem:[#allocation14 + $0x4] sm:$0xf]
        %v1268 = vld [vmem:[%s905] sm:$0xff]
        %v1269 = vld [vmem:[%s905 + $0x8] sm:$0xff]
        %v1270 = vld [vmem:[%s914] sm:$0xff]
        %v1271 = vld [vmem:[%s914 + $0x8] sm:$0xff]
        %v1276 = vunpack.c.l.b16 %v1262
        %v1277 = vunpack.c.l.b16 %v1263
        %v1278 = vunpack.c.l.b16 %v1264
        %v1279 = vunpack.c.l.b16 %v1265
        %v1280 = vpack.c.b16 %v1277, %v1276
        %v1281 = vpack.c.b16 %v1279, %v1278
        %vm1282 = vcmask 130048
        %v1284 = vsel %vm1282, %v1280, 0
        %v1287 = vsel %vm1282, %v1281, 0
        %1289 = vmatprep.subr.bf16.mxu0 0
        %1290 = vmatpush1.bf16.msra.mxu0 %v1260
        %1291 = vmatprep.subr.bf16.mxu0 0
        %1292 = vmatpush1.bf16.msra.mxu0 0
        %1293 = vmatprep.subr.bf16.mxu0 0
        %1294 = vmatpush1.bf16.msra.mxu0 0
        %1295 = vmatprep.subr.bf16.mxu0 0
        %1296 = vmatpush1.bf16.msra.mxu0 0
        %1297 = vmatprep.subr.bf16.mxu0 0
        %1298 = vmatpush1.bf16.msra.mxu0 0
        %1299 = vmatprep.subr.bf16.mxu0 0
        %1300 = vmatpush1.bf16.msra.mxu0 0
        %1301 = vmatprep.subr.bf16.mxu0 0
        %1302 = vmatpush1.bf16.msra.mxu0 0
        %1303 = vmatprep.subr.bf16.mxu0 0
        %1304 = vmatpush1.bf16.msra.mxu0 0
        %1305 = vmatprep.subr.bf16.mxu0 0
        %1306 = vmatpush1.bf16.msra.mxu0 0
        %1307 = vmatprep.subr.bf16.mxu0 0
        %1308 = vmatpush1.bf16.msra.mxu0 0
        %1309 = vmatprep.subr.bf16.mxu0 0
        %1310 = vmatpush1.bf16.msra.mxu0 0
        %1311 = vmatprep.subr.bf16.mxu0 0
        %1312 = vmatpush1.bf16.msra.mxu0 0
        %1313 = vmatprep.subr.bf16.mxu0 0
        %1314 = vmatpush1.bf16.msra.mxu0 0
        %1315 = vmatprep.subr.bf16.mxu0 0
        %1316 = vmatpush1.bf16.msra.mxu0 0
        %1317 = vmatprep.subr.bf16.mxu0 0
        %1318 = vmatpush1.bf16.msra.mxu0 0
        %1319 = vmatprep.subr.bf16.mxu0 0
        %1320 = vmatpush1.bf16.msra.mxu0 0
        %1321 = vmatprep.mubr.bf16.mxu0 0
        %1322 = vmatmul.mubr.bf16.gmra.mrb[0].mxu0 %v1284
        %v1323 = vpop.f32.mrb[0].mxu0
        %v1324 = vadd.f32 0.0, %v1323
        %v1325 = vpop.f32.mrb[0].mxu0
        %v1326 = vpop.f32.mrb[0].mxu0
        %v1327 = vadd.f32 0.0, %v1326
        %v1328 = vpop.f32.mrb[0].mxu0
        %1329 = vmatprep.mubr.bf16.mxu0 0
        %1330 = vmatmul.mubr.bf16.gmra.mrb[0].mxu0 %v1287
        %v1331 = vpop.f32.mrb[0].mxu0
        %v1332 = vadd.f32 0.0, %v1331
        %v1333 = vpop.f32.mrb[0].mxu0
        %v1334 = vpop.f32.mrb[0].mxu0
        %v1335 = vadd.f32 0.0, %v1334
        %v1336 = vpop.f32.mrb[0].mxu0
        %1337 = vdwg.mxu0
        %v1338 = vmul.f32 %v1324, %v1268
        %v1339 = vmul.f32 %v1327, %v1269
        %v1340 = vmul.f32 %v1332, %v1270
        %v1341 = vmul.f32 %v1335, %v1271
        %v1342 = vsub.f32 %v1338, %v1340
        %v1343 = vsub.f32 %v1339, %v1341
        %v1344 = vmul.f32 %v1324, %v1270
        %v1345 = vmul.f32 %v1327, %v1271
        %v1346 = vmul.f32 %v1332, %v1268
        %v1347 = vmul.f32 %v1335, %v1269
        %v1348 = vadd.f32 %v1344, %v1346
        %v1349 = vadd.f32 %v1345, %v1347
        %v1350 = vpack.c.bf16 %v1343, %v1342
        %v1351 = vpack.c.bf16 %v1349, %v1348
        %v1354 = vunpack.c.l.b16 %v1266
        %v1355 = vunpack.c.l.b16 %v1267
        %v1356 = vpack.c.b16 %v1355, %v1354
        %v1358 = vsel %vm1186, %v1356, 0
        %1360 = vmatprep.subr.bf16.mxu0 0
        %1361 = vmatpush1.bf16.msra.mxu0 %v1350
        %1362 = vmatprep.subr.bf16.mxu0 0
        %1363 = vmatpush1.bf16.msra.mxu0 %v1351
        %1364 = vmatprep.subr.bf16.mxu0 0
        %1365 = vmatpush1.bf16.msra.mxu0 0
        %1366 = vmatprep.subr.bf16.mxu0 0
        %1367 = vmatpush1.bf16.msra.mxu0 0
        %1368 = vmatprep.subr.bf16.mxu0 0
        %1369 = vmatpush1.bf16.msra.mxu0 0
        %1370 = vmatprep.subr.bf16.mxu0 0
        %1371 = vmatpush1.bf16.msra.mxu0 0
        %1372 = vmatprep.subr.bf16.mxu0 0
        %1373 = vmatpush1.bf16.msra.mxu0 0
        %1374 = vmatprep.subr.bf16.mxu0 0
        %1375 = vmatpush1.bf16.msra.mxu0 0
        %1376 = vmatprep.subr.bf16.mxu0 0
        %1377 = vmatpush1.bf16.msra.mxu0 0
        %1378 = vmatprep.subr.bf16.mxu0 0
        %1379 = vmatpush1.bf16.msra.mxu0 0
        %1380 = vmatprep.subr.bf16.mxu0 0
        %1381 = vmatpush1.bf16.msra.mxu0 0
        %1382 = vmatprep.subr.bf16.mxu0 0
        %1383 = vmatpush1.bf16.msra.mxu0 0
        %1384 = vmatprep.subr.bf16.mxu0 0
        %1385 = vmatpush1.bf16.msra.mxu0 0
        %1386 = vmatprep.subr.bf16.mxu0 0
        %1387 = vmatpush1.bf16.msra.mxu0 0
        %1388 = vmatprep.subr.bf16.mxu0 0
        %1389 = vmatpush1.bf16.msra.mxu0 0
        %1390 = vmatprep.subr.bf16.mxu0 0
        %1391 = vmatpush1.bf16.msra.mxu0 0
        %1392 = vmatprep.mubr.bf16.mxu0 0
        %1393 = vmatmul.mubr.bf16.gmra.mrb[0].mxu0 %v1358
        %v1394 = vpop.f32.mrb[0].mxu0
        %v1395 = vadd.f32 0.0, %v1394
        %v1396 = vpop.f32.mrb[0].mxu0
        %v1397 = vpop.f32.mrb[0].mxu0
        %v1398 = vadd.f32 0.0, %v1397
        %v1399 = vpop.f32.mrb[0].mxu0
        %1400 = vdwg.mxu0
        %1401 = vmatprep.subr.bf16.mxu0 0
        %1402 = vmatpush1.bf16.msra.mxu0 %v1261
        %1403 = vmatprep.subr.bf16.mxu0 0
        %1404 = vmatpush1.bf16.msra.mxu0 0
        %1405 = vmatprep.subr.bf16.mxu0 0
        %1406 = vmatpush1.bf16.msra.mxu0 0
        %1407 = vmatprep.subr.bf16.mxu0 0
        %1408 = vmatpush1.bf16.msra.mxu0 0
        %1409 = vmatprep.subr.bf16.mxu0 0
        %1410 = vmatpush1.bf16.msra.mxu0 0
        %1411 = vmatprep.subr.bf16.mxu0 0
        %1412 = vmatpush1.bf16.msra.mxu0 0
        %1413 = vmatprep.subr.bf16.mxu0 0
        %1414 = vmatpush1.bf16.msra.mxu0 0
        %1415 = vmatprep.subr.bf16.mxu0 0
        %1416 = vmatpush1.bf16.msra.mxu0 0
        %1417 = vmatprep.subr.bf16.mxu0 0
        %1418 = vmatpush1.bf16.msra.mxu0 0
        %1419 = vmatprep.subr.bf16.mxu0 0
        %1420 = vmatpush1.bf16.msra.mxu0 0
        %1421 = vmatprep.subr.bf16.mxu0 0
        %1422 = vmatpush1.bf16.msra.mxu0 0
        %1423 = vmatprep.subr.bf16.mxu0 0
        %1424 = vmatpush1.bf16.msra.mxu0 0
        %1425 = vmatprep.subr.bf16.mxu0 0
        %1426 = vmatpush1.bf16.msra.mxu0 0
        %1427 = vmatprep.subr.bf16.mxu0 0
        %1428 = vmatpush1.bf16.msra.mxu0 0
        %1429 = vmatprep.subr.bf16.mxu0 0
        %1430 = vmatpush1.bf16.msra.mxu0 0
        %1431 = vmatprep.subr.bf16.mxu0 0
        %1432 = vmatpush1.bf16.msra.mxu0 0
        %1433 = vmatprep.mubr.bf16.mxu0 0
        %1434 = vmatmul.mubr.bf16.gmra.mrb[0].mxu0 %v1284
        %v1435 = vpop.f32.mrb[0].mxu0
        %v1436 = vadd.f32 0.0, %v1435
        %v1437 = vpop.f32.mrb[0].mxu0
        %v1438 = vpop.f32.mrb[0].mxu0
        %v1439 = vadd.f32 0.0, %v1438
        %v1440 = vpop.f32.mrb[0].mxu0
        %1441 = vmatprep.mubr.bf16.mxu0 0
        %1442 = vmatmul.mubr.bf16.gmra.mrb[0].mxu0 %v1287
        %v1443 = vpop.f32.mrb[0].mxu0
        %v1444 = vadd.f32 0.0, %v1443
        %v1445 = vpop.f32.mrb[0].mxu0
        %v1446 = vpop.f32.mrb[0].mxu0
        %v1447 = vadd.f32 0.0, %v1446
        %v1448 = vpop.f32.mrb[0].mxu0
        %1449 = vdwg.mxu0
        %v1450 = vmul.f32 %v1436, %v1268
        %v1451 = vmul.f32 %v1439, %v1269
        %v1452 = vmul.f32 %v1444, %v1270
        %v1453 = vmul.f32 %v1447, %v1271
        %v1454 = vsub.f32 %v1450, %v1452
        %v1455 = vsub.f32 %v1451, %v1453
        %v1456 = vmul.f32 %v1436, %v1270
        %v1457 = vmul.f32 %v1439, %v1271
        %v1458 = vmul.f32 %v1444, %v1268
        %v1459 = vmul.f32 %v1447, %v1269
        %v1460 = vadd.f32 %v1456, %v1458
        %v1461 = vadd.f32 %v1457, %v1459
        %v1462 = vpack.c.bf16 %v1455, %v1454
        %v1463 = vpack.c.bf16 %v1461, %v1460
        %1464 = vmatprep.subr.bf16.mxu0 0
        %1465 = vmatpush1.bf16.msra.mxu0 %v1462
        %1466 = vmatprep.subr.bf16.mxu0 0
        %1467 = vmatpush1.bf16.msra.mxu0 %v1463
        %1468 = vmatprep.subr.bf16.mxu0 0
        %1469 = vmatpush1.bf16.msra.mxu0 0
        %1470 = vmatprep.subr.bf16.mxu0 0
        %1471 = vmatpush1.bf16.msra.mxu0 0
        %1472 = vmatprep.subr.bf16.mxu0 0
        %1473 = vmatpush1.bf16.msra.mxu0 0
        %1474 = vmatprep.subr.bf16.mxu0 0
        %1475 = vmatpush1.bf16.msra.mxu0 0
        %1476 = vmatprep.subr.bf16.mxu0 0
        %1477 = vmatpush1.bf16.msra.mxu0 0
        %1478 = vmatprep.subr.bf16.mxu0 0
        %1479 = vmatpush1.bf16.msra.mxu0 0
        %1480 = vmatprep.subr.bf16.mxu0 0
        %1481 = vmatpush1.bf16.msra.mxu0 0
        %1482 = vmatprep.subr.bf16.mxu0 0
        %1483 = vmatpush1.bf16.msra.mxu0 0
        %1484 = vmatprep.subr.bf16.mxu0 0
        %1485 = vmatpush1.bf16.msra.mxu0 0
        %1486 = vmatprep.subr.bf16.mxu0 0
        %1487 = vmatpush1.bf16.msra.mxu0 0
        %1488 = vmatprep.subr.bf16.mxu0 0
        %1489 = vmatpush1.bf16.msra.mxu0 0
        %1490 = vmatprep.subr.bf16.mxu0 0
        %1491 = vmatpush1.bf16.msra.mxu0 0
        %1492 = vmatprep.subr.bf16.mxu0 0
        %1493 = vmatpush1.bf16.msra.mxu0 0
        %1494 = vmatprep.subr.bf16.mxu0 0
        %1495 = vmatpush1.bf16.msra.mxu0 0
        %1496 = vmatprep.mubr.bf16.mxu0 0
        %1497 = vmatmul.mubr.bf16.gmra.mrb[0].mxu0 %v1358
        %v1498 = vpop.f32.mrb[0].mxu0
        %v1499 = vadd.f32 0.0, %v1498
        %v1500 = vpop.f32.mrb[0].mxu0
        %v1501 = vpop.f32.mrb[0].mxu0
        %v1502 = vadd.f32 0.0, %v1501
        %v1503 = vpop.f32.mrb[0].mxu0
        %1504 = vdwg.mxu0
        %v1505 = vld [vmem:[%s922] sm:$0x1]
        %v1506 = vld [vmem:[%s930] sm:$0x1]
        %v1507 = vsel %vm1186, %v1395, 0.0
        %1508 = vadd.xlane.f32.xlu0 %v1507
        %v1509 = vpop.xlane.xlu0 %1508
        %v1510 = vsel %vm1186, %v1398, 0.0
        %1511 = vadd.xlane.f32.xlu0 %v1510
        %v1512 = vpop.xlane.xlu0 %1511
        %v1513 = vsel %vm1186, %v1499, 0.0
        %1514 = vadd.xlane.f32.xlu0 %v1513
        %v1515 = vpop.xlane.xlu0 %1514
        %v1516 = vsel %vm1186, %v1502, 0.0
        %1517 = vadd.xlane.f32.xlu0 %v1516
        %v1518 = vpop.xlane.xlu0 %1517
        %v1519 = vmul.f32 %v1509, %v1199
        %v1520 = vmul.f32 %v1512, %v1199
        %v1521 = vmul.f32 %v1515, %v1199
        %v1522 = vmul.f32 %v1518, %v1199
        %v1523 = vsub.f32 %v1395, %v1519
        %v1524 = vsub.f32 %v1398, %v1520
        %v1525 = vsub.f32 %v1499, %v1521
        %v1526 = vsub.f32 %v1502, %v1522
        %v1527 = vmul.f32 %v1523, %v1523
        %v1528 = vmul.f32 %v1524, %v1524
        %v1529 = vmul.f32 %v1525, %v1525
        %v1530 = vmul.f32 %v1526, %v1526
        %v1531 = vsel %vm1186, %v1527, 0.0
        %1532 = vadd.xlane.f32.xlu0 %v1531
        %v1533 = vpop.xlane.xlu0 %1532
        %v1534 = vsel %vm1186, %v1528, 0.0
        %1535 = vadd.xlane.f32.xlu0 %v1534
        %v1536 = vpop.xlane.xlu0 %1535
        %v1537 = vsel %vm1186, %v1529, 0.0
        %1538 = vadd.xlane.f32.xlu0 %v1537
        %v1539 = vpop.xlane.xlu0 %1538
        %v1540 = vsel %vm1186, %v1530, 0.0
        %1541 = vadd.xlane.f32.xlu0 %v1540
        %v1542 = vpop.xlane.xlu0 %1541
        %v1543 = vmul.f32 %v1533, %v1199
        %v1544 = vmul.f32 %v1536, %v1199
        %v1545 = vmul.f32 %v1539, %v1199
        %v1546 = vmul.f32 %v1542, %v1199
        %v1547 = vadd.f32 %v1543, 1e-05
        %v1548 = vadd.f32 %v1544, 1e-05
        %v1549 = vadd.f32 %v1545, 1e-05
        %v1550 = vadd.f32 %v1546, 1e-05
        %v1551 = vrsqrt.pop %v1547
        %v1552 = vrsqrt.pop %v1548
        %v1553 = vrsqrt.pop %v1549
        %v1554 = vrsqrt.pop %v1550
        %v1555 = vmul.f32 %v1523, %v1551
        %v1556 = vmul.f32 %v1524, %v1552
        %v1557 = vmul.f32 %v1525, %v1553
        %v1558 = vmul.f32 %v1526, %v1554
        %v1560 = vlaneseq
        %v1561 = vshrl.u32 %v1560, 7
        %v1562 = vsub.s32 0, %v1561
        %v1563 = vrot.slane %v1505, %v1562
        %v1565 = vmul.f32 %v1555, %v1563
        %v1566 = vmul.f32 %v1556, %v1563
        %v1567 = vmul.f32 %v1557, %v1563
        %v1568 = vmul.f32 %v1558, %v1563
        %v1570 = vlaneseq
        %v1571 = vshrl.u32 %v1570, 7
        %v1572 = vsub.s32 0, %v1571
        %v1573 = vrot.slane %v1506, %v1572
        %v1575 = vadd.f32 %v1565, %v1573
        %v1576 = vadd.f32 %v1566, %v1573
        %v1577 = vadd.f32 %v1567, %v1573
        %v1578 = vadd.f32 %v1568, %v1573
        %v1579 = vpack.c.bf16 %v1576, %v1575
        %v1580 = vpack.c.bf16 %v1578, %v1577
        %v1581 = vld [vmem:[%s939] sm:$0xf]
        %v1582 = vld [vmem:[%s939 + $0x4] sm:$0xf]
        %v1583 = vld [vmem:[%s939 + $0x8] sm:$0xf]
        %v1584 = vld [vmem:[%s939 + $0xc] sm:$0xf]
        %v1585 = vld [vmem:[%s947] sm:$0x1]
        %v1587 = vlaneseq
        %v1588 = vshrl.u32 %v1587, 7
        %v1589 = vsub.s32 0, %v1588
        %v1590 = vrot.slane %v1585, %v1589
        %v1596 = vunpack.c.l.b16 %v1581
        %v1597 = vunpack.c.l.b16 %v1582
        %v1598 = vunpack.c.l.b16 %v1583
        %v1599 = vunpack.c.l.b16 %v1584
        %v1600 = vpack.c.b16 %v1597, %v1596
        %v1601 = vpack.c.b16 %v1599, %v1598
        %v1605 = vsel %vm1186, %v1579, 0
        %v1608 = vsel %vm1186, %v1580, 0
        %1610 = vmatprep.subr.bf16.mxu0 0
        %1611 = vmatpush1.bf16.msra.mxu0 %v1600
        %1612 = vmatprep.subr.bf16.mxu0 0
        %1613 = vmatpush1.bf16.msra.mxu0 %v1601
        %1614 = vmatprep.subr.bf16.mxu0 0
        %1615 = vmatpush1.bf16.msra.mxu0 0
        %1616 = vmatprep.subr.bf16.mxu0 0
        %1617 = vmatpush1.bf16.msra.mxu0 0
        %1618 = vmatprep.subr.bf16.mxu0 0
        %1619 = vmatpush1.bf16.msra.mxu0 0
        %1620 = vmatprep.subr.bf16.mxu0 0
        %1621 = vmatpush1.bf16.msra.mxu0 0
        %1622 = vmatprep.subr.bf16.mxu0 0
        %1623 = vmatpush1.bf16.msra.mxu0 0
        %1624 = vmatprep.subr.bf16.mxu0 0
        %1625 = vmatpush1.bf16.msra.mxu0 0
        %1626 = vmatprep.subr.bf16.mxu0 0
        %1627 = vmatpush1.bf16.msra.mxu0 0
        %1628 = vmatprep.subr.bf16.mxu0 0
        %1629 = vmatpush1.bf16.msra.mxu0 0
        %1630 = vmatprep.subr.bf16.mxu0 0
        %1631 = vmatpush1.bf16.msra.mxu0 0
        %1632 = vmatprep.subr.bf16.mxu0 0
        %1633 = vmatpush1.bf16.msra.mxu0 0
        %1634 = vmatprep.subr.bf16.mxu0 0
        %1635 = vmatpush1.bf16.msra.mxu0 0
        %1636 = vmatprep.subr.bf16.mxu0 0
        %1637 = vmatpush1.bf16.msra.mxu0 0
        %1638 = vmatprep.subr.bf16.mxu0 0
        %1639 = vmatpush1.bf16.msra.mxu0 0
        %1640 = vmatprep.subr.bf16.mxu0 0
        %1641 = vmatpush1.bf16.msra.mxu0 0
        %1642 = vmatprep.mubr.bf16.mxu0 0
        %1643 = vmatmul.mubr.bf16.gmra.mrb[0].mxu0 %v1605
        %v1644 = vpop.f32.mrb[0].mxu0
        %v1645 = vadd.f32 %v1590, %v1644
        %v1646 = vpop.f32.mrb[0].mxu0
        %v1647 = vpop.f32.mrb[0].mxu0
        %v1648 = vadd.f32 %v1590, %v1647
        %v1649 = vpop.f32.mrb[0].mxu0
        %1650 = vmatprep.mubr.bf16.mxu0 0
        %1651 = vmatmul.mubr.bf16.gmra.mrb[0].mxu0 %v1608
        %v1652 = vpop.f32.mrb[0].mxu0
        %v1653 = vadd.f32 %v1590, %v1652
        %v1654 = vpop.f32.mrb[0].mxu0
        %v1655 = vpop.f32.mrb[0].mxu0
        %v1656 = vadd.f32 %v1590, %v1655
        %v1657 = vpop.f32.mrb[0].mxu0
        %1658 = vdwg.mxu0
        %v1659 = vmul.f32 %v1645, 0.5
        %v1660 = vmul.f32 %v1648, 0.5
        %v1661 = vmul.f32 %v1653, 0.5
        %v1662 = vmul.f32 %v1656, 0.5
        %v1663 = vmul.f32 %v1645, 0.70710677
        %v1664 = vmul.f32 %v1648, 0.70710677
        %v1665 = vmul.f32 %v1653, 0.70710677
        %v1666 = vmul.f32 %v1656, 0.70710677
        %v1667 = vmax.f32 %v1663, -4.0
        %v1668 = vmax.f32 %v1664, -4.0
        %v1669 = vmax.f32 %v1665, -4.0
        %v1670 = vmax.f32 %v1666, -4.0
        %v1671 = vmin.f32 %v1667, 4.0
        %v1672 = vmin.f32 %v1668, 4.0
        %v1673 = vmin.f32 %v1669, 4.0
        %v1674 = vmin.f32 %v1670, 4.0
        %v1675 = vmul.f32 %v1671, %v1671
        %v1676 = vmul.f32 %v1672, %v1672
        %v1677 = vmul.f32 %v1673, %v1673
        %v1678 = vmul.f32 %v1674, %v1674
        %v1679 = vmul.f32 %v1675, -2.7261424e-10
        %v1680 = vmul.f32 %v1676, -2.7261424e-10
        %v1681 = vmul.f32 %v1677, -2.7261424e-10
        %v1682 = vmul.f32 %v1678, -2.7261424e-10
        %v1683 = vadd.f32 %v1679, 2.7706815e-08
        %v1684 = vadd.f32 %v1680, 2.7706815e-08
        %v1685 = vadd.f32 %v1681, 2.7706815e-08
        %v1686 = vadd.f32 %v1682, 2.7706815e-08
        %v1687 = vmul.f32 %v1675, %v1683
        %v1688 = vmul.f32 %v1676, %v1684
        %v1689 = vmul.f32 %v1677, %v1685
        %v1690 = vmul.f32 %v1678, %v1686
        %v1691 = vadd.f32 %v1687, -2.101024e-06
        %v1692 = vadd.f32 %v1688, -2.101024e-06
        %v1693 = vadd.f32 %v1689, -2.101024e-06
        %v1694 = vadd.f32 %v1690, -2.101024e-06
        %v1695 = vmul.f32 %v1675, %v1691
        %v1696 = vmul.f32 %v1676, %v1692
        %v1697 = vmul.f32 %v1677, %v1693
        %v1698 = vmul.f32 %v1678, %v1694
        %v1699 = vadd.f32 %v1695, -5.6925062e-05
        %v1700 = vadd.f32 %v1696, -5.6925062e-05
        %v1701 = vadd.f32 %v1697, -5.6925062e-05
        %v1702 = vadd.f32 %v1698, -5.6925062e-05
        %v1703 = vmul.f32 %v1675, %v1699
        %v1704 = vmul.f32 %v1676, %v1700
        %v1705 = vmul.f32 %v1677, %v1701
        %v1706 = vmul.f32 %v1678, %v1702
        %v1707 = vadd.f32 %v1703, -0.00073499064
        %v1708 = vadd.f32 %v1704, -0.00073499064
        %v1709 = vadd.f32 %v1705, -0.00073499064
        %v1710 = vadd.f32 %v1706, -0.00073499064
        %v1711 = vmul.f32 %v1675, %v1707
        %v1712 = vmul.f32 %v1676, %v1708
        %v1713 = vmul.f32 %v1677, %v1709
        %v1714 = vmul.f32 %v1678, %v1710
        %v1715 = vadd.f32 %v1711, -0.0029546
        %v1716 = vadd.f32 %v1712, -0.0029546
        %v1717 = vadd.f32 %v1713, -0.0029546
        %v1718 = vadd.f32 %v1714, -0.0029546
        %v1719 = vmul.f32 %v1675, %v1715
        %v1720 = vmul.f32 %v1676, %v1716
        %v1721 = vmul.f32 %v1677, %v1717
        %v1722 = vmul.f32 %v1678, %v1718
        %v1723 = vadd.f32 %v1719, -0.016096033
        %v1724 = vadd.f32 %v1720, -0.016096033
        %v1725 = vadd.f32 %v1721, -0.016096033
        %v1726 = vadd.f32 %v1722, -0.016096033
        %v1727 = vmul.f32 %v1671, %v1723
        %v1728 = vmul.f32 %v1672, %v1724
        %v1729 = vmul.f32 %v1673, %v1725
        %v1730 = vmul.f32 %v1674, %v1726
        %v1731 = vmul.f32 %v1675, -1.45660715e-05
        %v1732 = vmul.f32 %v1676, -1.45660715e-05
        %v1733 = vmul.f32 %v1677, -1.45660715e-05
        %v1734 = vmul.f32 %v1678, -1.45660715e-05
        %v1735 = vadd.f32 %v1731, -0.00021337405
        %v1736 = vadd.f32 %v1732, -0.00021337405
        %v1737 = vadd.f32 %v1733, -0.00021337405
        %v1738 = vadd.f32 %v1734, -0.00021337405
        %v1739 = vmul.f32 %v1675, %v1735
        %v1740 = vmul.f32 %v1676, %v1736
        %v1741 = vmul.f32 %v1677, %v1737
        %v1742 = vmul.f32 %v1678, %v1738
        %v1743 = vadd.f32 %v1739, -0.001682827
        %v1744 = vadd.f32 %v1740, -0.001682827
        %v1745 = vadd.f32 %v1741, -0.001682827
        %v1746 = vadd.f32 %v1742, -0.001682827
        %v1747 = vmul.f32 %v1675, %v1743
        %v1748 = vmul.f32 %v1676, %v1744
        %v1749 = vmul.f32 %v1677, %v1745
        %v1750 = vmul.f32 %v1678, %v1746
        %v1751 = vadd.f32 %v1747, -0.0073733293
        %v1752 = vadd.f32 %v1748, -0.0073733293
        %v1753 = vadd.f32 %v1749, -0.0073733293
        %v1754 = vadd.f32 %v1750, -0.0073733293
        %v1755 = vmul.f32 %v1675, %v1751
        %v1756 = vmul.f32 %v1676, %v1752
        %v1757 = vmul.f32 %v1677, %v1753
        %v1758 = vmul.f32 %v1678, %v1754
        %v1759 = vadd.f32 %v1755, -0.014264739
        %v1760 = vadd.f32 %v1756, -0.014264739
        %v1761 = vadd.f32 %v1757, -0.014264739
        %v1762 = vadd.f32 %v1758, -0.014264739
        %v1763 = vrcp.pop %v1759
        %v1764 = vmul.f32 %v1727, %v1763
        %v1765 = vrcp.pop %v1760
        %v1766 = vmul.f32 %v1728, %v1765
        %v1767 = vrcp.pop %v1761
        %v1768 = vmul.f32 %v1729, %v1767
        %v1769 = vrcp.pop %v1762
        %v1770 = vmul.f32 %v1730, %v1769
        %v1771 = vadd.f32 %v1764, 1.0
        %v1772 = vadd.f32 %v1766, 1.0
        %v1773 = vadd.f32 %v1768, 1.0
        %v1774 = vadd.f32 %v1770, 1.0
        %v1775 = vmul.f32 %v1659, %v1771
        %v1776 = vmul.f32 %v1660, %v1772
        %v1777 = vmul.f32 %v1661, %v1773
        %v1778 = vmul.f32 %v1662, %v1774
        %v1779 = vpack.c.bf16 %v1776, %v1775
        %v1780 = vpack.c.bf16 %v1778, %v1777
        %v1781 = vld [vmem:[%s956] sm:$0xf]
        %v1782 = vld [vmem:[%s956 + $0x4] sm:$0xf]
        %v1783 = vld [vmem:[%s956 + $0x8] sm:$0xf]
        %v1784 = vld [vmem:[%s956 + $0xc] sm:$0xf]
        %v1785 = vld [vmem:[%s956 + $0x10] sm:$0xf]
        %v1786 = vld [vmem:[%s956 + $0x14] sm:$0xf]
        %v1787 = vld [vmem:[%s956 + $0x18] sm:$0xf]
        %v1788 = vld [vmem:[%s956 + $0x1c] sm:$0xf]
        %v1789 = vld [vmem:[%s956 + $0x20] sm:$0xf]
        %v1790 = vld [vmem:[%s956 + $0x24] sm:$0xf]
        %v1791 = vld [vmem:[%s956 + $0x28] sm:$0xf]
        %v1792 = vld [vmem:[%s956 + $0x2c] sm:$0xf]
        %v1793 = vld [vmem:[%s956 + $0x30] sm:$0xf]
        %v1794 = vld [vmem:[%s956 + $0x34] sm:$0xf]
        %v1795 = vld [vmem:[%s956 + $0x38] sm:$0xf]
        %v1796 = vld [vmem:[%s956 + $0x3c] sm:$0xf]
        %v1797 = vld [vmem:[%s964] sm:$0x1]
        %v1799 = vlaneseq
        %v1800 = vshrl.u32 %v1799, 7
        %v1801 = vsub.s32 0, %v1800
        %v1802 = vrot.slane %v1797, %v1801
        %v1820 = vunpack.c.l.b16 %v1781
        %v1821 = vunpack.c.l.b16 %v1782
        %v1822 = vunpack.c.l.b16 %v1783
        %v1823 = vunpack.c.l.b16 %v1784
        %v1824 = vunpack.c.l.b16 %v1785
        %v1825 = vunpack.c.l.b16 %v1786
        %v1826 = vunpack.c.l.b16 %v1787
        %v1827 = vunpack.c.l.b16 %v1788
        %v1828 = vunpack.c.l.b16 %v1789
        %v1829 = vunpack.c.l.b16 %v1790
        %v1830 = vunpack.c.l.b16 %v1791
        %v1831 = vunpack.c.l.b16 %v1792
        %v1832 = vunpack.c.l.b16 %v1793
        %v1833 = vunpack.c.l.b16 %v1794
        %v1834 = vunpack.c.l.b16 %v1795
        %v1835 = vunpack.c.l.b16 %v1796
        %v1836 = vpack.c.b16 %v1821, %v1820
        %v1837 = vpack.c.b16 %v1823, %v1822
        %v1838 = vpack.c.b16 %v1825, %v1824
        %v1839 = vpack.c.b16 %v1827, %v1826
        %v1840 = vpack.c.b16 %v1829, %v1828
        %v1841 = vpack.c.b16 %v1831, %v1830
        %v1842 = vpack.c.b16 %v1833, %v1832
        %v1843 = vpack.c.b16 %v1835, %v1834
        %1852 = vmatprep.subr.bf16.mxu0 0
        %1853 = vmatpush1.bf16.msra.mxu0 %v1836
        %1854 = vmatprep.subr.bf16.mxu0 0
        %1855 = vmatpush1.bf16.msra.mxu0 %v1837
        %1856 = vmatprep.subr.bf16.mxu0 0
        %1857 = vmatpush1.bf16.msra.mxu0 %v1838
        %1858 = vmatprep.subr.bf16.mxu0 0
        %1859 = vmatpush1.bf16.msra.mxu0 %v1839
        %1860 = vmatprep.subr.bf16.mxu0 0
        %1861 = vmatpush1.bf16.msra.mxu0 %v1840
        %1862 = vmatprep.subr.bf16.mxu0 0
        %1863 = vmatpush1.bf16.msra.mxu0 %v1841
        %1864 = vmatprep.subr.bf16.mxu0 0
        %1865 = vmatpush1.bf16.msra.mxu0 %v1842
        %1866 = vmatprep.subr.bf16.mxu0 0
        %1867 = vmatpush1.bf16.msra.mxu0 %v1843
        %1868 = vmatprep.subr.bf16.mxu0 0
        %1869 = vmatpush1.bf16.msra.mxu0 0
        %1870 = vmatprep.subr.bf16.mxu0 0
        %1871 = vmatpush1.bf16.msra.mxu0 0
        %1872 = vmatprep.subr.bf16.mxu0 0
        %1873 = vmatpush1.bf16.msra.mxu0 0
        %1874 = vmatprep.subr.bf16.mxu0 0
        %1875 = vmatpush1.bf16.msra.mxu0 0
        %1876 = vmatprep.subr.bf16.mxu0 0
        %1877 = vmatpush1.bf16.msra.mxu0 0
        %1878 = vmatprep.subr.bf16.mxu0 0
        %1879 = vmatpush1.bf16.msra.mxu0 0
        %1880 = vmatprep.subr.bf16.mxu0 0
        %1881 = vmatpush1.bf16.msra.mxu0 0
        %1882 = vmatprep.subr.bf16.mxu0 0
        %1883 = vmatpush1.bf16.msra.mxu0 0
        %1884 = vmatprep.mubr.bf16.mxu0 0
        %1885 = vmatmul.mubr.bf16.gmra.mrb[0].mxu0 %v1779
        %v1886 = vpop.f32.mrb[0].mxu0
        %v1887 = vadd.f32 %v1802, %v1886
        %v1888 = vpop.f32.mrb[0].mxu0
        %v1889 = vpop.f32.mrb[0].mxu0
        %v1890 = vadd.f32 %v1802, %v1889
        %v1891 = vpop.f32.mrb[0].mxu0
        %1892 = vmatprep.mubr.bf16.mxu0 0
        %1893 = vmatmul.mubr.bf16.gmra.mrb[0].mxu0 %v1780
        %v1894 = vpop.f32.mrb[0].mxu0
        %v1895 = vadd.f32 %v1802, %v1894
        %v1896 = vpop.f32.mrb[0].mxu0
        %v1897 = vpop.f32.mrb[0].mxu0
        %v1898 = vadd.f32 %v1802, %v1897
        %v1899 = vpop.f32.mrb[0].mxu0
        %1900 = vdwg.mxu0
        %v1901 = vadd.f32 %v1180, %v1887
        %v1902 = vadd.f32 %v1181, %v1890
        %v1903 = vadd.f32 %v1182, %v1895
        %v1904 = vadd.f32 %v1183, %v1898
        %1905 = vst.msk [vmem:[#allocation2] sm:$0xff] %vm1186, %v1901
        %1906 = vst.msk [vmem:[#allocation2 + $0x8] sm:$0xff] %vm1186, %v1902
        %1907 = vst.msk [vmem:[#allocation2 + $0x10] sm:$0xff] %vm1186, %v1903
        %1908 = vst.msk [vmem:[#allocation2 + $0x18] sm:$0xff] %vm1186, %v1904
        %p1909 = scmp.eq.s32.totalorder %s56, 1
        // Predicated region
        $region177: #{tpu_custom_call.1} parent=95 // pred_check
          %p1910 = pneg %p1909
        $region178: #{tpu_custom_call.1} parent=95 // pred_check_branch
          %1912 = sbr.rel (%p1910) target = $region180
        $region179: #{tpu_custom_call.1} parent=95 // pred_region
          %v1913 = vld [vmem:[#allocation2] sm:$0xff]
          %v1914 = vld [vmem:[#allocation2 + $0x8] sm:$0xff]
          %v1915 = vld [vmem:[#allocation2 + $0x10] sm:$0xff]
          %v1916 = vld [vmem:[#allocation2 + $0x18] sm:$0xff]
          %v1917 = vld [vmem:[#allocation27] sm:$0x1]
          %v1918 = vld [vmem:[#allocation29] sm:$0x1]
          %v1919 = vsel %vm1186, %v1913, 0.0
          %1920 = vadd.xlane.f32.xlu0 %v1919
          %v1921 = vpop.xlane.xlu0 %1920
          %v1922 = vsel %vm1186, %v1914, 0.0
          %1923 = vadd.xlane.f32.xlu0 %v1922
          %v1924 = vpop.xlane.xlu0 %1923
          %v1925 = vsel %vm1186, %v1915, 0.0
          %1926 = vadd.xlane.f32.xlu0 %v1925
          %v1927 = vpop.xlane.xlu0 %1926
          %v1928 = vsel %vm1186, %v1916, 0.0
          %1929 = vadd.xlane.f32.xlu0 %v1928
          %v1930 = vpop.xlane.xlu0 %1929
          %v1931 = vmul.f32 %v1921, %v1199
          %v1932 = vmul.f32 %v1924, %v1199
          %v1933 = vmul.f32 %v1927, %v1199
          %v1934 = vmul.f32 %v1930, %v1199
          %v1935 = vsub.f32 %v1913, %v1931
          %v1936 = vsub.f32 %v1914, %v1932
          %v1937 = vsub.f32 %v1915, %v1933
          %v1938 = vsub.f32 %v1916, %v1934
          %v1939 = vmul.f32 %v1935, %v1935
          %v1940 = vmul.f32 %v1936, %v1936
          %v1941 = vmul.f32 %v1937, %v1937
          %v1942 = vmul.f32 %v1938, %v1938
          %v1943 = vsel %vm1186, %v1939, 0.0
          %1944 = vadd.xlane.f32.xlu0 %v1943
          %v1945 = vpop.xlane.xlu0 %1944
          %v1946 = vsel %vm1186, %v1940, 0.0
          %1947 = vadd.xlane.f32.xlu0 %v1946
          %v1948 = vpop.xlane.xlu0 %1947
          %v1949 = vsel %vm1186, %v1941, 0.0
          %1950 = vadd.xlane.f32.xlu0 %v1949
          %v1951 = vpop.xlane.xlu0 %1950
          %v1952 = vsel %vm1186, %v1942, 0.0
          %1953 = vadd.xlane.f32.xlu0 %v1952
          %v1954 = vpop.xlane.xlu0 %1953
          %v1955 = vmul.f32 %v1945, %v1199
          %v1956 = vmul.f32 %v1948, %v1199
          %v1957 = vmul.f32 %v1951, %v1199
          %v1958 = vmul.f32 %v1954, %v1199
          %v1959 = vadd.f32 %v1955, 1e-05
          %v1960 = vadd.f32 %v1956, 1e-05
          %v1961 = vadd.f32 %v1957, 1e-05
          %v1962 = vadd.f32 %v1958, 1e-05
          %v1963 = vrsqrt.pop %v1959
          %v1964 = vrsqrt.pop %v1960
          %v1965 = vrsqrt.pop %v1961
          %v1966 = vrsqrt.pop %v1962
          %v1967 = vmul.f32 %v1935, %v1963
          %v1968 = vmul.f32 %v1936, %v1964
          %v1969 = vmul.f32 %v1937, %v1965
          %v1970 = vmul.f32 %v1938, %v1966
          %v1972 = vlaneseq
          %v1973 = vshrl.u32 %v1972, 7
          %v1974 = vsub.s32 0, %v1973
          %v1975 = vrot.slane %v1917, %v1974
          %v1977 = vmul.f32 %v1967, %v1975
          %v1978 = vmul.f32 %v1968, %v1975
          %v1979 = vmul.f32 %v1969, %v1975
          %v1980 = vmul.f32 %v1970, %v1975
          %v1982 = vlaneseq
          %v1983 = vshrl.u32 %v1982, 7
          %v1984 = vsub.s32 0, %v1983
          %v1985 = vrot.slane %v1918, %v1984
          %v1987 = vadd.f32 %v1977, %v1985
          %v1988 = vadd.f32 %v1978, %v1985
          %v1989 = vadd.f32 %v1979, %v1985
          %v1990 = vadd.f32 %v1980, %v1985
          %v1991 = vsel %vm1186, %v1987, 0.0
          %v1992 = vsel %vm1186, %v1988, 0.0
          %v1993 = vadd.f32 %v1991, %v1992
          %v1994 = vrot.slane %v1993, 4
          %v1995 = vadd.f32 %v1993, %v1994
          %v1996 = vrot.slane %v1995, 2
          %v1997 = vadd.f32 %v1995, %v1996
          %v1998 = vrot.slane %v1997, 1
          %v1999 = vadd.f32 %v1997, %v1998
          %v2000 = vsel %vm1186, %v1989, 0.0
          %v2001 = vsel %vm1186, %v1990, 0.0
          %v2002 = vadd.f32 %v2000, %v2001
          %v2003 = vrot.slane %v2002, 4
          %v2004 = vadd.f32 %v2002, %v2003
          %v2005 = vrot.slane %v2004, 2
          %v2006 = vadd.f32 %v2004, %v2005
          %v2007 = vrot.slane %v2006, 1
          %v2008 = vadd.f32 %v2006, %v2007
          %v2009 = vrcp.pop 16.0
          %v2010 = vmul.f32 %v1999, %v2009
          %v2011 = vmul.f32 %v2008, %v2009
          %v2012 = vld [vmem:[#allocation30] sm:$0xff]
          %v2013 = vld [vmem:[#allocation30 + $0x8] sm:$0xff]
          %v2014 = vld [vmem:[#allocation30 + $0x10] sm:$0xff]
          %v2015 = vld [vmem:[#allocation30 + $0x18] sm:$0xff]
          %v2016 = vld [vmem:[#allocation32] sm:$0x1]
          %v2018 = vlaneseq
          %v2019 = vshrl.u32 %v2018, 7
          %v2020 = vsub.s32 0, %v2019
          %v2021 = vrot.slane %v2016, %v2020
          %vm2025 = vcmask 1041409
          %v2026 = vsel %vm2025, %v2011, %v2010
          %v2027 = vsel %vm1186, %v2026, 0
          %2029 = vmatprep.subr.mxu0 0.0
          %2030 = vmatpush1.msra.mxu0 %v2012
          %2031 = vmatprep.subr.mxu0 0.0
          %2032 = vmatpush1.msra.mxu0 %v2013
          %2033 = vmatprep.subr.mxu0 0.0
          %2034 = vmatpush1.msra.mxu0 %v2014
          %2035 = vmatprep.subr.mxu0 0.0
          %2036 = vmatpush1.msra.mxu0 %v2015
          %2037 = vmatprep.subr.mxu0 0.0
          %2038 = vmatpush1.msra.mxu0 0.0
          %2039 = vmatprep.subr.mxu0 0.0
          %2040 = vmatpush1.msra.mxu0 0.0
          %2041 = vmatprep.subr.mxu0 0.0
          %2042 = vmatpush1.msra.mxu0 0.0
          %2043 = vmatprep.subr.mxu0 0.0
          %2044 = vmatpush1.msra.mxu0 0.0
          %2045 = vmatprep.subr.mxu0 0.0
          %2046 = vmatpush1.msra.mxu0 0.0
          %2047 = vmatprep.subr.mxu0 0.0
          %2048 = vmatpush1.msra.mxu0 0.0
          %2049 = vmatprep.subr.mxu0 0.0
          %2050 = vmatpush1.msra.mxu0 0.0
          %2051 = vmatprep.subr.mxu0 0.0
          %2052 = vmatpush1.msra.mxu0 0.0
          %2053 = vmatprep.subr.mxu0 0.0
          %2054 = vmatpush1.msra.mxu0 0.0
          %2055 = vmatprep.subr.mxu0 0.0
          %2056 = vmatpush1.msra.mxu0 0.0
          %2057 = vmatprep.subr.mxu0 0.0
          %2058 = vmatpush1.msra.mxu0 0.0
          %2059 = vmatprep.subr.mxu0 0.0
          %2060 = vmatpush1.msra.mxu0 0.0
          %2061 = vmatprep.subr.mxu0 0.0
          %2062 = vmatpush1.msra.mxu0 0.0
          %2063 = vmatprep.subr.mxu0 0.0
          %2064 = vmatpush1.msra.mxu0 0.0
          %2065 = vmatprep.subr.mxu0 0.0
          %2066 = vmatpush1.msra.mxu0 0.0
          %2067 = vmatprep.subr.mxu0 0.0
          %2068 = vmatpush1.msra.mxu0 0.0
          %2069 = vmatprep.subr.mxu0 0.0
          %2070 = vmatpush1.msra.mxu0 0.0
          %2071 = vmatprep.subr.mxu0 0.0
          %2072 = vmatpush1.msra.mxu0 0.0
          %2073 = vmatprep.subr.mxu0 0.0
          %2074 = vmatpush1.msra.mxu0 0.0
          %2075 = vmatprep.subr.mxu0 0.0
          %2076 = vmatpush1.msra.mxu0 0.0
          %2077 = vmatprep.subr.mxu0 0.0
          %2078 = vmatpush1.msra.mxu0 0.0
          %2079 = vmatprep.subr.mxu0 0.0
          %2080 = vmatpush1.msra.mxu0 0.0
          %2081 = vmatprep.subr.mxu0 0.0
          %2082 = vmatpush1.msra.mxu0 0.0
          %2083 = vmatprep.subr.mxu0 0.0
          %2084 = vmatpush1.msra.mxu0 0.0
          %2085 = vmatprep.subr.mxu0 0.0
          %2086 = vmatpush1.msra.mxu0 0.0
          %2087 = vmatprep.subr.mxu0 0.0
          %2088 = vmatpush1.msra.mxu0 0.0
          %2089 = vmatprep.subr.mxu0 0.0
          %2090 = vmatpush1.msra.mxu0 0.0
          %2091 = vmatprep.subr.mxu0 0.0
          %2092 = vmatpush1.msra.mxu0 0.0
          %2093 = vmatprep.mubr.f32.mxu0 0.0
          %2094 = vmatmul.mubr.f32.gmra.mrb[0].mxu0 %v2027
          %v2095 = vpop.f32.mrb[0].mxu0
          %v2096 = vadd.f32 %v2021, %v2095
          %v2097 = vpop.f32.mrb[0].mxu0
          %2098 = vdwg.mxu0
          %vm2099 = vcmask 74752
          %2100 = vst.msk [vmem:[#allocation33] sm:$0x3] %vm2099, %v2096
        $region180: #{tpu_custom_call.1} parent=95 // pred_fallthru
          _
        // Predicated region
        $region181: #{tpu_custom_call.1} parent=95 // pred_check
          %p2101 = pneg %p535
        $region182: #{tpu_custom_call.1} parent=95 // pred_check_branch
          %2103 = sbr.rel (%p2101) target = $region184
        $region183: #{tpu_custom_call.1} parent=95 // pred_region
          %s2105 = ssub.s32 32, 32
          %2106 = vsyncadd [#allocation5], %s2105
          %s2107 = smul.addr %s55, 32
          %s2108 = scalar_lea.hbm %s19, %s2107
          %s2110 = sshll.u32 [#allocation33], 4
          %s2111 = int_to_ptr.vmem [resolvable:$true] %s2110
          %2113 = dma.vmem_to_hbm [thread:$0]  %s2111, 32, %s2108, [#allocation5]
        $region184: #{tpu_custom_call.1} parent=95 // pred_fallthru
          _
        // Predicated region
        $region185: #{tpu_custom_call.1} parent=95 // pred_check
          %p2114 = pneg %p535
        $region186: #{tpu_custom_call.1} parent=95 // pred_check_branch
          %2116 = sbr.rel (%p2114) target = $region188
        $region187: #{tpu_custom_call.1} parent=95 // pred_region
          %2117 = dma.done [#allocation5], 32
        $region188: #{tpu_custom_call.1} parent=95 // pred_fallthru
          _
      $region96: #{tpu_custom_call.1} parent=5 // pred_fallthru
        _
      %p2118 = scmp.le.s32.totalorder 2, %s46
      // Predicated region
      $region189: #{tpu_custom_call.1} parent=5 // pred_check
        %p2119 = pneg %p2118
      $region190: #{tpu_custom_call.1} parent=5 // pred_check_branch
        %2121 = sbr.rel (%p2119) target = $region192
      $region191: #{tpu_custom_call.1} parent=5 // pred_region
        %s2122 = ssub.s32 %s46, 2
      $region192: #{tpu_custom_call.1} parent=5 // pred_fallthru
        _
    $region6: #{tpu_custom_call.1} parent=1 // loop_footer
      %s50 = sadd.s32 1, %s46
    $region7: #{tpu_custom_call.1} parent=1 // loop_footer_branch
      %45 = sbr.rel target = $region3
    $region8: #{tpu_custom_call.1} parent=1 // loop_exit
      _
    %2123 = vsyncpa [#allocation4], 1
    %s2124 = scalar_lea.sflag [#allocation4], 1
    %2125 = vsyncpa %s2124, 1
    %2126 = vsyncpa [#allocation7], 1
    %2127 = vsyncpa [#allocation10], 1
    %s2128 = scalar_lea.sflag [#allocation10], 1
    %2129 = vsyncpa %s2128, 1
    %2130 = vsyncpa [#allocation13], 1
    %2131 = vsyncpa [#allocation16], 1
    %s2132 = scalar_lea.sflag [#allocation16], 1
    %2133 = vsyncpa %s2132, 1
    %2134 = vsyncpa [#allocation19], 1
    %s2135 = scalar_lea.sflag [#allocation19], 1
    %2136 = vsyncpa %s2135, 1
    %2137 = vsyncpa [#allocation22], 1
    %s2138 = scalar_lea.sflag [#allocation22], 1
    %2139 = vsyncpa %s2138, 1
    %2140 = vsyncpa [#allocation25], 1
    %s2141 = scalar_lea.sflag [#allocation25], 1
    %2142 = vsyncpa %s2141, 1
    %2143 = vsyncpa [#allocation28], 1
    %2144 = vsyncpa [#allocation31], 1
    %2145 = vsyncpa [#allocation5], 1
    %s2146 = scalar_lea.sflag [#allocation5], 1
    %2147 = vsyncpa %s2146, 1

</llo_original>
